<compile_context>
chip_gen: v7x
topology: tpu7x:2x2x1
jax: 0.10.0
libtpu: 0.0.40
codegen_flags: <defaults>
</compile_context>

<pallas_src>
import functools
import math

import jax
import jax.numpy as jnp
from jax.experimental import pallas as pl
from jax.experimental.pallas import tpu as pltpu


def _round_up(x, m):
    return (x + m - 1) // m * m


def _cdiv(a, b):
    return -(-a // b)


def _conv2d_kernel(x_ref, w_ref, b_ref, o_ref, slab_ref, *,
                   kh, kw, cin_grp, wp, hwp_pad):
    """One grid step = one (image, H-tile).

    x_ref   : (1, 1, Cin_grp, flat_pad)   flattened, halo'd input window
    w_ref   : (Cout_pad, K)               im2col weight matrix (compute dtype)
    b_ref   : (Cout_pad, 1)               f32 bias column
    o_ref   : (1, Cout_pad, hwp_pad)      lane-dense output tile
    slab_ref: (K, hwp_pad)                VMEM im2col slab, K = KH*KW*Cin_grp
    """
    # im2col: tap (i, j) is the contiguous flat window starting at i*Wp + j.
    # Destination rows [t*Cin_grp, (t+1)*Cin_grp) are packed-sublane aligned
    # and the lane extent is the full (128-multiple) slab width -> dense vst.
    for t in range(kh * kw):
        i, j = divmod(t, kw)
        s = i * wp + j                                   # static lane offset
        slab_ref[t * cin_grp:(t + 1) * cin_grp, :] = x_ref[0, 0, :, s:s + hwp_pad]

    # Single MXU matmul over the whole receptive field, f32 accumulation.
    acc = jnp.dot(w_ref[...], slab_ref[...], preferred_element_type=jnp.float32)
    o_ref[0] = (acc + b_ref[...]).astype(o_ref.dtype)


def conv2d_pallas(x_nchw, weight_oihw, bias, *, stride=1, padding=0,
                  compute_dtype=jnp.bfloat16, tile_h=None):
    """Equivalent of F.conv2d(x, w, b, stride=1, padding=padding), NCHW in/out.

    compute_dtype: dtype of the MXU operands (bf16 default; accumulation is
      always f32 via preferred_element_type).
    tile_h: rows of H_out per grid step (None -> auto-sized for ~20 MiB VMEM).
    """
    assert stride == 1 or stride == (1, 1), "only stride=1 implemented"
    n, cin, h, w = x_nchw.shape
    cout, cin_w, kh, kw = weight_oihw.shape
    assert cin == cin_w
    if bias is None:
        bias = jnp.zeros((cout,), x_nchw.dtype)
    ph, pw = (padding, padding) if isinstance(padding, int) else tuple(padding)

    hp, wp = h + 2 * ph, w + 2 * pw
    h_out, w_out = hp - kh + 1, wp - kw + 1
    assert h_out > 0 and w_out > 0

    cdt = jnp.dtype(compute_dtype)
    cbytes = cdt.itemsize
    sub = 8 * (4 // cbytes)                 # packed sublane tile: 8 f32 / 16 bf16
    cin_grp = _round_up(cin, sub)
    cout_pad = _round_up(cout, sub)
    k = kh * kw * cin_grp                   # contraction dim (no 128-padding)

    # ---- H tiling with a (kh-1)-row halo, sized for ~20 MiB of live blocks ----
    if tile_h is None:
        per_lane = k * cbytes + 2 * cout_pad * 4 + 2 * cin_grp * cbytes
        lanes = max(256, (20 * 1024 * 1024) // per_lane)
        tile_h = max(1, lanes // wp)
    th = max(1, min(tile_h, h_out))
    n_h = _cdiv(h_out, th)
    hwp_pad = _round_up(th * wp, 128)                        # lanes per tile
    flat_pad = _round_up((kh - 1) * wp + (kw - 1) + hwp_pad, 128)
    win_rows = th + kh - 1
    hp_ext = n_h * th + kh - 1                               # >= hp

    # ---- single fused producer: cast + channel/spatial pad + halo windows ----
    x_pad = jnp.pad(x_nchw.astype(compute_dtype),
                    ((0, 0), (0, cin_grp - cin),
                     (ph, hp_ext - h - ph), (pw, pw)))
    row_idx = jnp.arange(n_h)[:, None] * th + jnp.arange(win_rows)[None, :]
    x_win = x_pad[:, :, row_idx, :]                   # (N, Cg, n_h, win_rows, Wp)
    x_win = jnp.transpose(x_win, (0, 2, 1, 3, 4))     # (N, n_h, Cg, win_rows, Wp)
    x_win = x_win.reshape(n, n_h, cin_grp, win_rows * wp)
    x_prep = jnp.pad(x_win, ((0, 0), (0, 0), (0, 0),
                             (0, flat_pad - win_rows * wp)))

    # weights: (O, Cin, KH, KW) -> (Cout_pad, KH*KW*Cin_grp); row order matches
    # the slab (t = i*kw + j outermost, channel innermost).
    w_mat = jnp.transpose(weight_oihw, (0, 2, 3, 1))
    w_mat = jnp.pad(w_mat, ((0, cout_pad - cout), (0, 0), (0, 0),
                            (0, cin_grp - cin)))
    w_mat = w_mat.reshape(cout_pad, k).astype(compute_dtype)

    b_col = jnp.pad(bias, (0, cout_pad - cout)).astype(jnp.float32)
    b_col = b_col.reshape(cout_pad, 1)

    kernel = functools.partial(_conv2d_kernel, kh=kh, kw=kw, cin_grp=cin_grp,
                               wp=wp, hwp_pad=hwp_pad)

    # VMEM limit derived from the actual block sizes (+ headroom), capped so it
    # stays safe on v7x's 64 MiB.
    need = (2 * cin_grp * flat_pad * cbytes        # input window (double buffered)
            + 2 * cout_pad * hwp_pad * 4           # output tile (double buffered)
            + 2 * cout_pad * k * cbytes            # weights (<=2 buffers)
            + 2 * cout_pad * 128 * 4               # bias (lane padded)
            + k * hwp_pad * cbytes)                # im2col slab scratch
    vmem_limit = int(min(max(need + 8 * 2**20, 24 * 2**20), 48 * 2**20))

    out_shape = jax.ShapeDtypeStruct((n, cout_pad, n_h * hwp_pad), x_nchw.dtype)

    def build_and_call(single_buffer_consts):
        if single_buffer_consts:
            w_spec = pl.BlockSpec((cout_pad, k), lambda b, t: (0, 0),
                                  pipeline_mode=pl.Buffered(1))
            b_spec = pl.BlockSpec((cout_pad, 1), lambda b, t: (0, 0),
                                  pipeline_mode=pl.Buffered(1))
        else:
            w_spec = pl.BlockSpec((cout_pad, k), lambda b, t: (0, 0))
            b_spec = pl.BlockSpec((cout_pad, 1), lambda b, t: (0, 0))
        return pl.pallas_call(
            kernel,
            out_shape=out_shape,
            grid_spec=pltpu.PrefetchScalarGridSpec(
                num_scalar_prefetch=0,
                grid=(n, n_h),
                in_specs=[
                    pl.BlockSpec((1, 1, cin_grp, flat_pad),
                                 lambda b, t: (b, t, 0, 0)),
                    w_spec,
                    b_spec,
                ],
                out_specs=pl.BlockSpec((1, cout_pad, hwp_pad),
                                       lambda b, t: (b, 0, t)),
                scratch_shapes=[pltpu.VMEM((k, hwp_pad), compute_dtype)],
            ),
            compiler_params=pltpu.CompilerParams(
                dimension_semantics=("parallel", "parallel"),
                vmem_limit_bytes=vmem_limit),
        )(x_prep, w_mat, b_col)

    try:
        out = build_and_call(True)     # single-buffer grid-invariant weight/bias
    except Exception:                  # fallback if pipeline_mode is unsupported
        out = build_and_call(False)

    # Epilogue (one fused copy): drop lane padding, junk "wide" columns, and
    # the Cout / H padding. Output is already channel-major -> no transpose.
    out = out.reshape(n, cout_pad, n_h, hwp_pad)[:, :cout, :, :th * wp]
    out = out.reshape(n, cout, n_h, th, wp)[:, :, :, :, :w_out]
    out = out.reshape(n, cout, n_h * th, w_out)[:, :, :h_out, :]
    return out


if __name__ == "__main__":
    key = jax.random.PRNGKey(0)
    k_x, k_w, k_b = jax.random.split(key, 3)

    # Module config: Conv2d(in_channels=4, out_channels=8, kernel_size=3,
    #                       stride=1, padding=1, bias=True)
    N, Cin, H, W = 2, 4, 16, 16
    Cout, KH, KW = 8, 3, 3

    x = jax.random.normal(k_x, (N, Cin, H, W), dtype=jnp.float32)

    # Deterministic init matching PyTorch reset_parameters:
    # kaiming_uniform_(a=sqrt(5)) -> U(-1/sqrt(fan_in), 1/sqrt(fan_in))
    fan_in = Cin * KH * KW
    bound = 1.0 / math.sqrt(fan_in)
    weight = jax.random.uniform(k_w, (Cout, Cin, KH, KW),
                                minval=-bound, maxval=bound, dtype=jnp.float32)
    bias = jax.random.uniform(k_b, (Cout,), minval=-bound, maxval=bound,
                              dtype=jnp.float32)

    # Reference (same semantics as F.conv2d).
    ref = jax.lax.conv_general_dilated(
        x, weight, window_strides=(1, 1), padding=((1, 1), (1, 1)),
        dimension_numbers=("NCHW", "OIHW", "NCHW")) + bias[None, :, None, None]

    # Default path (auto tile -> one H tile per image at this size).
    out = conv2d_pallas(x, weight, bias, stride=1, padding=1)
    out = jax.block_until_ready(out)
    assert out.shape == (N, Cout, H, W)
    assert bool(jnp.allclose(out, ref, atol=5e-2, rtol=5e-2)), \
        float(jnp.max(jnp.abs(out - ref)))

    # Also exercise the halo'd H-tiling path (grid = (N, 2)).
    out_tiled = conv2d_pallas(x, weight, bias, stride=1, padding=1, tile_h=8)
    out_tiled = jax.block_until_ready(out_tiled)
    assert bool(jnp.allclose(out_tiled, ref, atol=5e-2, rtol=5e-2)), \
        float(jnp.max(jnp.abs(out_tiled - ref)))

    print("KERNEL_OK")
</pallas_src>

<mosaic_0001>
module attributes {stable_mosaic.version = 11 : i64} {
  func.func @_conv2d_kernel(%arg0: i32, %arg1: i32, %arg2: memref<1x1x16x512xbf16, #tpu.memory_space<vmem>>, %arg3: memref<16x144xbf16, #tpu.memory_space<vmem>>, %arg4: memref<16x1xf32, #tpu.memory_space<vmem>>, %arg5: memref<1x16x384xf32, #tpu.memory_space<vmem>>, %arg6: memref<144x384xbf16, #tpu.memory_space<vmem>>) attributes {dimension_semantics = [#tpu.dimension_semantics<parallel>, #tpu.dimension_semantics<parallel>], iteration_bounds = array<i64: 2, 1>, scalar_prefetch = 0 : i64, scratch_operands = 1 : i64, tpu.core_type = #tpu.core_type<tc>, window_params = [{transform_indices = @transform_0, window_bounds = array<i64: 1, 1, 16, 512>}, {pipeline_mode = #tpu.pipeline_mode<synchronous>, transform_indices = @transform_1, window_bounds = array<i64: 16, 144>}, {pipeline_mode = #tpu.pipeline_mode<synchronous>, transform_indices = @transform_2, window_bounds = array<i64: 16, 1>}, {transform_indices = @transform_3, window_bounds = array<i64: 1, 16, 384>}]} {
    %c0 = arith.constant 0 : index
    %c0_0 = arith.constant 0 : index
    %c0_1 = arith.constant 0 : index
    %c0_2 = arith.constant 0 : index
    %0 = vector.load %arg2[%c0, %c0_0, %c0_1, %c0_2] : memref<1x1x16x512xbf16, #tpu.memory_space<vmem>>, vector<1x1x16x384xbf16>
    %1 = vector.shape_cast %0 : vector<1x1x16x384xbf16> to vector<16x384xbf16>
    %c0_3 = arith.constant 0 : index
    %c0_4 = arith.constant 0 : index
    %2 = vector.load %arg6[%c0_3, %c0_4] : memref<144x384xbf16, #tpu.memory_space<vmem>>, vector<16x384xbf16>
    tpu.vector_store %arg6[%c0_3, %c0_4], %1 {strides = array<i32>} : memref<144x384xbf16, #tpu.memory_space<vmem>>, vector<16x384xbf16>,
    %c0_5 = arith.constant 0 : index
    %c0_6 = arith.constant 0 : index
    %c0_7 = arith.constant 0 : index
    %c1 = arith.constant 1 : index
    %3 = vector.load %arg2[%c0_5, %c0_6, %c0_7, %c1] : memref<1x1x16x512xbf16, #tpu.memory_space<vmem>>, vector<1x1x16x384xbf16>
    %4 = vector.shape_cast %3 : vector<1x1x16x384xbf16> to vector<16x384xbf16>
    %c16 = arith.constant 16 : index
    %c0_8 = arith.constant 0 : index
    %5 = vector.load %arg6[%c16, %c0_8] : memref<144x384xbf16, #tpu.memory_space<vmem>>, vector<16x384xbf16>
    tpu.vector_store %arg6[%c16, %c0_8], %4 {strides = array<i32>} : memref<144x384xbf16, #tpu.memory_space<vmem>>, vector<16x384xbf16>,
    %c0_9 = arith.constant 0 : index
    %c0_10 = arith.constant 0 : index
    %c0_11 = arith.constant 0 : index
    %c2 = arith.constant 2 : index
    %6 = vector.load %arg2[%c0_9, %c0_10, %c0_11, %c2] : memref<1x1x16x512xbf16, #tpu.memory_space<vmem>>, vector<1x1x16x384xbf16>
    %7 = vector.shape_cast %6 : vector<1x1x16x384xbf16> to vector<16x384xbf16>
    %c32 = arith.constant 32 : index
    %c0_12 = arith.constant 0 : index
    %8 = vector.load %arg6[%c32, %c0_12] : memref<144x384xbf16, #tpu.memory_space<vmem>>, vector<16x384xbf16>
    tpu.vector_store %arg6[%c32, %c0_12], %7 {strides = array<i32>} : memref<144x384xbf16, #tpu.memory_space<vmem>>, vector<16x384xbf16>,
    %c0_13 = arith.constant 0 : index
    %c0_14 = arith.constant 0 : index
    %c0_15 = arith.constant 0 : index
    %c18 = arith.constant 18 : index
    %9 = vector.load %arg2[%c0_13, %c0_14, %c0_15, %c18] : memref<1x1x16x512xbf16, #tpu.memory_space<vmem>>, vector<1x1x16x384xbf16>
    %10 = vector.shape_cast %9 : vector<1x1x16x384xbf16> to vector<16x384xbf16>
    %c48 = arith.constant 48 : index
    %c0_16 = arith.constant 0 : index
    %11 = vector.load %arg6[%c48, %c0_16] : memref<144x384xbf16, #tpu.memory_space<vmem>>, vector<16x384xbf16>
    tpu.vector_store %arg6[%c48, %c0_16], %10 {strides = array<i32>} : memref<144x384xbf16, #tpu.memory_space<vmem>>, vector<16x384xbf16>,
    %c0_17 = arith.constant 0 : index
    %c0_18 = arith.constant 0 : index
    %c0_19 = arith.constant 0 : index
    %c19 = arith.constant 19 : index
    %12 = vector.load %arg2[%c0_17, %c0_18, %c0_19, %c19] : memref<1x1x16x512xbf16, #tpu.memory_space<vmem>>, vector<1x1x16x384xbf16>
    %13 = vector.shape_cast %12 : vector<1x1x16x384xbf16> to vector<16x384xbf16>
    %c64 = arith.constant 64 : index
    %c0_20 = arith.constant 0 : index
    %14 = vector.load %arg6[%c64, %c0_20] : memref<144x384xbf16, #tpu.memory_space<vmem>>, vector<16x384xbf16>
    tpu.vector_store %arg6[%c64, %c0_20], %13 {strides = array<i32>} : memref<144x384xbf16, #tpu.memory_space<vmem>>, vector<16x384xbf16>,
    %c0_21 = arith.constant 0 : index
    %c0_22 = arith.constant 0 : index
    %c0_23 = arith.constant 0 : index
    %c20 = arith.constant 20 : index
    %15 = vector.load %arg2[%c0_21, %c0_22, %c0_23, %c20] : memref<1x1x16x512xbf16, #tpu.memory_space<vmem>>, vector<1x1x16x384xbf16>
    %16 = vector.shape_cast %15 : vector<1x1x16x384xbf16> to vector<16x384xbf16>
    %c80 = arith.constant 80 : index
    %c0_24 = arith.constant 0 : index
    %17 = vector.load %arg6[%c80, %c0_24] : memref<144x384xbf16, #tpu.memory_space<vmem>>, vector<16x384xbf16>
    tpu.vector_store %arg6[%c80, %c0_24], %16 {strides = array<i32>} : memref<144x384xbf16, #tpu.memory_space<vmem>>, vector<16x384xbf16>,
    %c0_25 = arith.constant 0 : index
    %c0_26 = arith.constant 0 : index
    %c0_27 = arith.constant 0 : index
    %c36 = arith.constant 36 : index
    %18 = vector.load %arg2[%c0_25, %c0_26, %c0_27, %c36] : memref<1x1x16x512xbf16, #tpu.memory_space<vmem>>, vector<1x1x16x384xbf16>
    %19 = vector.shape_cast %18 : vector<1x1x16x384xbf16> to vector<16x384xbf16>
    %c96 = arith.constant 96 : index
    %c0_28 = arith.constant 0 : index
    %20 = vector.load %arg6[%c96, %c0_28] : memref<144x384xbf16, #tpu.memory_space<vmem>>, vector<16x384xbf16>
    tpu.vector_store %arg6[%c96, %c0_28], %19 {strides = array<i32>} : memref<144x384xbf16, #tpu.memory_space<vmem>>, vector<16x384xbf16>,
    %c0_29 = arith.constant 0 : index
    %c0_30 = arith.constant 0 : index
    %c0_31 = arith.constant 0 : index
    %c37 = arith.constant 37 : index
    %21 = vector.load %arg2[%c0_29, %c0_30, %c0_31, %c37] : memref<1x1x16x512xbf16, #tpu.memory_space<vmem>>, vector<1x1x16x384xbf16>
    %22 = vector.shape_cast %21 : vector<1x1x16x384xbf16> to vector<16x384xbf16>
    %c112 = arith.constant 112 : index
    %c0_32 = arith.constant 0 : index
    %23 = vector.load %arg6[%c112, %c0_32] : memref<144x384xbf16, #tpu.memory_space<vmem>>, vector<16x384xbf16>
    tpu.vector_store %arg6[%c112, %c0_32], %22 {strides = array<i32>} : memref<144x384xbf16, #tpu.memory_space<vmem>>, vector<16x384xbf16>,
    %c0_33 = arith.constant 0 : index
    %c0_34 = arith.constant 0 : index
    %c0_35 = arith.constant 0 : index
    %c38 = arith.constant 38 : index
    %24 = vector.load %arg2[%c0_33, %c0_34, %c0_35, %c38] : memref<1x1x16x512xbf16, #tpu.memory_space<vmem>>, vector<1x1x16x384xbf16>
    %25 = vector.shape_cast %24 : vector<1x1x16x384xbf16> to vector<16x384xbf16>
    %c128 = arith.constant 128 : index
    %c0_36 = arith.constant 0 : index
    %26 = vector.load %arg6[%c128, %c0_36] : memref<144x384xbf16, #tpu.memory_space<vmem>>, vector<16x384xbf16>
    tpu.vector_store %arg6[%c128, %c0_36], %25 {strides = array<i32>} : memref<144x384xbf16, #tpu.memory_space<vmem>>, vector<16x384xbf16>,
    %c0_37 = arith.constant 0 : index
    %c0_38 = arith.constant 0 : index
    %27 = vector.load %arg3[%c0_37, %c0_38] : memref<16x144xbf16, #tpu.memory_space<vmem>>, vector<16x144xbf16>
    %c0_39 = arith.constant 0 : index
    %c0_40 = arith.constant 0 : index
    %28 = vector.load %arg6[%c0_39, %c0_40] : memref<144x384xbf16, #tpu.memory_space<vmem>>, vector<144x384xbf16>
    %cst = arith.constant dense<0.000000e+00> : vector<16x384xf32>
    %29 = tpu.matmul %27, %28, %cst {dimension_numbers = #tpu.dot_dimension_numbers<[1], [0], [0], [1], [0, 0, 1, 1], [], []>} : vector<16x144xbf16>, vector<144x384xbf16>, vector<16x384xf32> -> vector<16x384xf32>
    %c0_41 = arith.constant 0 : index
    %c0_42 = arith.constant 0 : index
    %30 = vector.load %arg4[%c0_41, %c0_42] : memref<16x1xf32, #tpu.memory_space<vmem>>, vector<16x1xf32>
    %31 = vector.broadcast %30 : vector<16x1xf32> to vector<16x384xf32>
    %32 = arith.addf %29, %31 : vector<16x384xf32>
    %c0_43 = arith.constant 0 : index
    %c0_44 = arith.constant 0 : index
    %c0_45 = arith.constant 0 : index
    %33 = vector.load %arg5[%c0_43, %c0_44, %c0_45] : memref<1x16x384xf32, #tpu.memory_space<vmem>>, vector<1x16x384xf32>
    %34 = vector.shape_cast %33 : vector<1x16x384xf32> to vector<16x384xf32>
    %35 = vector.shape_cast %32 : vector<16x384xf32> to vector<1x16x384xf32>
    tpu.vector_store %arg5[%c0_43, %c0_44, %c0_45], %35 {strides = array<i32>} : memref<1x16x384xf32, #tpu.memory_space<vmem>>, vector<1x16x384xf32>,
    return
  }
  func.func @transform_0(%arg0: i32, %arg1: i32) -> (i32, i32, i32, i32) {
    %c0_i32 = arith.constant 0 : i32
    %c0_i32_0 = arith.constant 0 : i32
    %c0_i32_1 = arith.constant 0 : i32
    return %arg0, %arg1, %c0_i32, %c0_i32_0 : i32, i32, i32, i32
  }
  func.func @transform_1(%arg0: i32, %arg1: i32) -> (i32, i32) {
    %c0_i32 = arith.constant 0 : i32
    %c0_i32_0 = arith.constant 0 : i32
    %c0_i32_1 = arith.constant 0 : i32
    return %c0_i32, %c0_i32_0 : i32, i32
  }
  func.func @transform_2(%arg0: i32, %arg1: i32) -> (i32, i32) {
    %c0_i32 = arith.constant 0 : i32
    %c0_i32_0 = arith.constant 0 : i32
    %c0_i32_1 = arith.constant 0 : i32
    return %c0_i32, %c0_i32_0 : i32, i32
  }
  func.func @transform_3(%arg0: i32, %arg1: i32) -> (i32, i32, i32) {
    %c0_i32 = arith.constant 0 : i32
    %c0_i32_0 = arith.constant 0 : i32
    return %arg0, %c0_i32, %arg1 : i32, i32, i32
  }
}

module attributes {stable_mosaic.version = 11 : i64} {
  func.func @_conv2d_kernel(%arg0: i32, %arg1: i32, %arg2: memref<1x1x16x512xbf16, #tpu.memory_space<vmem>>, %arg3: memref<16x144xbf16, #tpu.memory_space<vmem>>, %arg4: memref<16x1xf32, #tpu.memory_space<vmem>>, %arg5: memref<1x16x384xf32, #tpu.memory_space<vmem>>, %arg6: memref<144x384xbf16, #tpu.memory_space<vmem>>) attributes {dimension_semantics = [#tpu.dimension_semantics<parallel>, #tpu.dimension_semantics<parallel>], iteration_bounds = array<i64: 2, 1>, scalar_prefetch = 0 : i64, scratch_operands = 1 : i64, tpu.core_type = #tpu.core_type<tc>, window_params = [{transform_indices = @transform_0, window_bounds = array<i64: 1, 1, 16, 512>}, {pipeline_mode = #tpu.pipeline_mode<synchronous>, transform_indices = @transform_1, window_bounds = array<i64: 16, 144>}, {pipeline_mode = #tpu.pipeline_mode<synchronous>, transform_indices = @transform_2, window_bounds = array<i64: 16, 1>}, {transform_indices = @transform_3, window_bounds = array<i64: 1, 16, 384>}]} {
    %c0 = arith.constant 0 : index
    %c0_0 = arith.constant 0 : index
    %c0_1 = arith.constant 0 : index
    %c0_2 = arith.constant 0 : index
    %0 = vector.load %arg2[%c0, %c0_0, %c0_1, %c0_2] : memref<1x1x16x512xbf16, #tpu.memory_space<vmem>>, vector<1x1x16x384xbf16>
    %1 = vector.shape_cast %0 : vector<1x1x16x384xbf16> to vector<16x384xbf16>
    %c0_3 = arith.constant 0 : index
    %c0_4 = arith.constant 0 : index
    %2 = vector.load %arg6[%c0_3, %c0_4] : memref<144x384xbf16, #tpu.memory_space<vmem>>, vector<16x384xbf16>
    tpu.vector_store %arg6[%c0_3, %c0_4], %1 {strides = array<i32>} : memref<144x384xbf16, #tpu.memory_space<vmem>>, vector<16x384xbf16>,
    %c0_5 = arith.constant 0 : index
    %c0_6 = arith.constant 0 : index
    %c0_7 = arith.constant 0 : index
    %c1 = arith.constant 1 : index
    %3 = vector.load %arg2[%c0_5, %c0_6, %c0_7, %c1] : memref<1x1x16x512xbf16, #tpu.memory_space<vmem>>, vector<1x1x16x384xbf16>
    %4 = vector.shape_cast %3 : vector<1x1x16x384xbf16> to vector<16x384xbf16>
    %c16 = arith.constant 16 : index
    %c0_8 = arith.constant 0 : index
    %5 = vector.load %arg6[%c16, %c0_8] : memref<144x384xbf16, #tpu.memory_space<vmem>>, vector<16x384xbf16>
    tpu.vector_store %arg6[%c16, %c0_8], %4 {strides = array<i32>} : memref<144x384xbf16, #tpu.memory_space<vmem>>, vector<16x384xbf16>,
    %c0_9 = arith.constant 0 : index
    %c0_10 = arith.constant 0 : index
    %c0_11 = arith.constant 0 : index
    %c2 = arith.constant 2 : index
    %6 = vector.load %arg2[%c0_9, %c0_10, %c0_11, %c2] : memref<1x1x16x512xbf16, #tpu.memory_space<vmem>>, vector<1x1x16x384xbf16>
    %7 = vector.shape_cast %6 : vector<1x1x16x384xbf16> to vector<16x384xbf16>
    %c32 = arith.constant 32 : index
    %c0_12 = arith.constant 0 : index
    %8 = vector.load %arg6[%c32, %c0_12] : memref<144x384xbf16, #tpu.memory_space<vmem>>, vector<16x384xbf16>
    tpu.vector_store %arg6[%c32, %c0_12], %7 {strides = array<i32>} : memref<144x384xbf16, #tpu.memory_space<vmem>>, vector<16x384xbf16>,
    %c0_13 = arith.constant 0 : index
    %c0_14 = arith.constant 0 : index
    %c0_15 = arith.constant 0 : index
    %c18 = arith.constant 18 : index
    %9 = vector.load %arg2[%c0_13, %c0_14, %c0_15, %c18] : memref<1x1x16x512xbf16, #tpu.memory_space<vmem>>, vector<1x1x16x384xbf16>
    %10 = vector.shape_cast %9 : vector<1x1x16x384xbf16> to vector<16x384xbf16>
    %c48 = arith.constant 48 : index
    %c0_16 = arith.constant 0 : index
    %11 = vector.load %arg6[%c48, %c0_16] : memref<144x384xbf16, #tpu.memory_space<vmem>>, vector<16x384xbf16>
    tpu.vector_store %arg6[%c48, %c0_16], %10 {strides = array<i32>} : memref<144x384xbf16, #tpu.memory_space<vmem>>, vector<16x384xbf16>,
    %c0_17 = arith.constant 0 : index
    %c0_18 = arith.constant 0 : index
    %c0_19 = arith.constant 0 : index
    %c19 = arith.constant 19 : index
    %12 = vector.load %arg2[%c0_17, %c0_18, %c0_19, %c19] : memref<1x1x16x512xbf16, #tpu.memory_space<vmem>>, vector<1x1x16x384xbf16>
    %13 = vector.shape_cast %12 : vector<1x1x16x384xbf16> to vector<16x384xbf16>
    %c64 = arith.constant 64 : index
    %c0_20 = arith.constant 0 : index
    %14 = vector.load %arg6[%c64, %c0_20] : memref<144x384xbf16, #tpu.memory_space<vmem>>, vector<16x384xbf16>
    tpu.vector_store %arg6[%c64, %c0_20], %13 {strides = array<i32>} : memref<144x384xbf16, #tpu.memory_space<vmem>>, vector<16x384xbf16>,
    %c0_21 = arith.constant 0 : index
    %c0_22 = arith.constant 0 : index
    %c0_23 = arith.constant 0 : index
    %c20 = arith.constant 20 : index
    %15 = vector.load %arg2[%c0_21, %c0_22, %c0_23, %c20] : memref<1x1x16x512xbf16, #tpu.memory_space<vmem>>, vector<1x1x16x384xbf16>
    %16 = vector.shape_cast %15 : vector<1x1x16x384xbf16> to vector<16x384xbf16>
    %c80 = arith.constant 80 : index
    %c0_24 = arith.constant 0 : index
    %17 = vector.load %arg6[%c80, %c0_24] : memref<144x384xbf16, #tpu.memory_space<vmem>>, vector<16x384xbf16>
    tpu.vector_store %arg6[%c80, %c0_24], %16 {strides = array<i32>} : memref<144x384xbf16, #tpu.memory_space<vmem>>, vector<16x384xbf16>,
    %c0_25 = arith.constant 0 : index
    %c0_26 = arith.constant 0 : index
    %c0_27 = arith.constant 0 : index
    %c36 = arith.constant 36 : index
    %18 = vector.load %arg2[%c0_25, %c0_26, %c0_27, %c36] : memref<1x1x16x512xbf16, #tpu.memory_space<vmem>>, vector<1x1x16x384xbf16>
    %19 = vector.shape_cast %18 : vector<1x1x16x384xbf16> to vector<16x384xbf16>
    %c96 = arith.constant 96 : index
    %c0_28 = arith.constant 0 : index
    %20 = vector.load %arg6[%c96, %c0_28] : memref<144x384xbf16, #tpu.memory_space<vmem>>, vector<16x384xbf16>
    tpu.vector_store %arg6[%c96, %c0_28], %19 {strides = array<i32>} : memref<144x384xbf16, #tpu.memory_space<vmem>>, vector<16x384xbf16>,
    %c0_29 = arith.constant 0 : index
    %c0_30 = arith.constant 0 : index
    %c0_31 = arith.constant 0 : index
    %c37 = arith.constant 37 : index
    %21 = vector.load %arg2[%c0_29, %c0_30, %c0_31, %c37] : memref<1x1x16x512xbf16, #tpu.memory_space<vmem>>, vector<1x1x16x384xbf16>
    %22 = vector.shape_cast %21 : vector<1x1x16x384xbf16> to vector<16x384xbf16>
    %c112 = arith.constant 112 : index
    %c0_32 = arith.constant 0 : index
    %23 = vector.load %arg6[%c112, %c0_32] : memref<144x384xbf16, #tpu.memory_space<vmem>>, vector<16x384xbf16>
    tpu.vector_store %arg6[%c112, %c0_32], %22 {strides = array<i32>} : memref<144x384xbf16, #tpu.memory_space<vmem>>, vector<16x384xbf16>,
    %c0_33 = arith.constant 0 : index
    %c0_34 = arith.constant 0 : index
    %c0_35 = arith.constant 0 : index
    %c38 = arith.constant 38 : index
    %24 = vector.load %arg2[%c0_33, %c0_34, %c0_35, %c38] : memref<1x1x16x512xbf16, #tpu.memory_space<vmem>>, vector<1x1x16x384xbf16>
    %25 = vector.shape_cast %24 : vector<1x1x16x384xbf16> to vector<16x384xbf16>
    %c128 = arith.constant 128 : index
    %c0_36 = arith.constant 0 : index
    %26 = vector.load %arg6[%c128, %c0_36] : memref<144x384xbf16, #tpu.memory_space<vmem>>, vector<16x384xbf16>
    tpu.vector_store %arg6[%c128, %c0_36], %25 {strides = array<i32>} : memref<144x384xbf16, #tpu.memory_space<vmem>>, vector<16x384xbf16>,
    %c0_37 = arith.constant 0 : index
    %c0_38 = arith.constant 0 : index
    %27 = vector.load %arg3[%c0_37, %c0_38] : memref<16x144xbf16, #tpu.memory_space<vmem>>, vector<16x144xbf16>
    %c0_39 = arith.constant 0 : index
    %c0_40 = arith.constant 0 : index
    %28 = vector.load %arg6[%c0_39, %c0_40] : memref<144x384xbf16, #tpu.memory_space<vmem>>, vector<144x384xbf16>
    %cst = arith.constant dense<0.000000e+00> : vector<16x384xf32>
    %29 = tpu.matmul %27, %28, %cst {dimension_numbers = #tpu.dot_dimension_numbers<[1], [0], [0], [1], [0, 0, 1, 1], [], []>} : vector<16x144xbf16>, vector<144x384xbf16>, vector<16x384xf32> -> vector<16x384xf32>
    %c0_41 = arith.constant 0 : index
    %c0_42 = arith.constant 0 : index
    %30 = vector.load %arg4[%c0_41, %c0_42] : memref<16x1xf32, #tpu.memory_space<vmem>>, vector<16x1xf32>
    %31 = vector.broadcast %30 : vector<16x1xf32> to vector<16x384xf32>
    %32 = arith.addf %29, %31 : vector<16x384xf32>
    %c0_43 = arith.constant 0 : index
    %c0_44 = arith.constant 0 : index
    %c0_45 = arith.constant 0 : index
    %33 = vector.load %arg5[%c0_43, %c0_44, %c0_45] : memref<1x16x384xf32, #tpu.memory_space<vmem>>, vector<1x16x384xf32>
    %34 = vector.shape_cast %33 : vector<1x16x384xf32> to vector<16x384xf32>
    %35 = vector.shape_cast %32 : vector<16x384xf32> to vector<1x16x384xf32>
    tpu.vector_store %arg5[%c0_43, %c0_44, %c0_45], %35 {strides = array<i32>} : memref<1x16x384xf32, #tpu.memory_space<vmem>>, vector<1x16x384xf32>,
    return
  }
  func.func @transform_0(%arg0: i32, %arg1: i32) -> (i32, i32, i32, i32) {
    %c0_i32 = arith.constant 0 : i32
    %c0_i32_0 = arith.constant 0 : i32
    %c0_i32_1 = arith.constant 0 : i32
    return %arg0, %arg1, %c0_i32, %c0_i32_0 : i32, i32, i32, i32
  }
  func.func @transform_1(%arg0: i32, %arg1: i32) -> (i32, i32) {
    %c0_i32 = arith.constant 0 : i32
    %c0_i32_0 = arith.constant 0 : i32
    %c0_i32_1 = arith.constant 0 : i32
    return %c0_i32, %c0_i32_0 : i32, i32
  }
  func.func @transform_2(%arg0: i32, %arg1: i32) -> (i32, i32) {
    %c0_i32 = arith.constant 0 : i32
    %c0_i32_0 = arith.constant 0 : i32
    %c0_i32_1 = arith.constant 0 : i32
    return %c0_i32, %c0_i32_0 : i32, i32
  }
  func.func @transform_3(%arg0: i32, %arg1: i32) -> (i32, i32, i32) {
    %c0_i32 = arith.constant 0 : i32
    %c0_i32_0 = arith.constant 0 : i32
    return %arg0, %c0_i32, %arg1 : i32, i32, i32
  }
}

</mosaic_0001>

<llo_original>
// kernel: tpu_custom_call.1
$region0: #{tpu_custom_call.1}
  #allocation0 [shape = 'u32[]', space=smem, size = 0x4, offset = 0x4, fixed_abs, tag = 'smem constant byte address 0x4 - core index']
  #allocation1 [shape = 'u32[144,128]{1,0:T(1,128)}', space=vmem, size = 0x12000, scoped, tag = 'internal scratch']
  #allocation2 [shape = 'bf16[144,384]{1,0:T(16,128)(2,1)}', space=vmem, size = 0x1b000, scoped, tag = 'scratch operand']
  %s0 = inlined_call_operand.hbm [shape: bf16[2,1,16,512], index: 0, kind: input, shape index: {}]
  %s1 = inlined_call_operand.vmem [shape: bf16[16,144], index: 1, kind: input, shape index: {}]
  %s2 = inlined_call_operand.vmem [shape: f32[16,1], index: 2, kind: input, shape index: {}]
  %s3 = inlined_call_operand.hbm [shape: f32[2,16,384], index: 3, kind: output, shape index: {}]
  %s4 = sld [smem:[#allocation0]]
  $region49: #{tpu_custom_call.1} parent=0
    _
  %s6 = ssub.s32 1, %s4
  %s7 = scalar_select 0, %s6, %s4
  $region1: #{tpu_custom_call.1} parent=0
    #allocation3 [shape = 'u8[32768]{0}', space=vmem, size = 0x8000, scoped, tag = 'input window, operand 0']
    #allocation4 [shape = 's32[2]{0}', space=sflag, size = 0x8, scoped, tag = 'scoped memory for tpu_custom_call.1']
    #allocation5 [shape = 's32[2]{0}', space=sflag, size = 0x8, scoped, tag = 'scoped memory for tpu_custom_call.1']
    #allocation6 [shape = 'u8[49152]{0}', space=vmem, size = 0xc000, scoped, tag = 'output window, operand 0']
    %8 = vsyncpa [#allocation4], 0
    %s9 = scalar_lea.sflag [#allocation4], 1
    %10 = vsyncpa %s9, 0
    %11 = vsyncpa [#allocation5], 0
    %s12 = scalar_lea.sflag [#allocation5], 1
    %13 = vsyncpa %s12, 0
    loop: start=0, step=1, limit=4
    $region2: #{tpu_custom_call.1} parent=1 // loop_pre_header
      _
    $region3: #{tpu_custom_call.1} parent=1 // loop_header
      %s15 = sphi 0, %s19
      %p16 = scmp.ge.s32.totalorder %s15, 4
      %s22 = sphi 0, %s34
      %s23 = sphi 0, %s30
      %s24 = sphi 0, %s22
      %s25 = sphi 0, %s23
      %s26 = sphi 0, %s24
      %s27 = sphi 0, %s25
      %s39 = sphi 0, %s41
      %s42 = sphi 0, %s39
      %s43 = sphi 0, %s42
      %s59 = sphi 0, %s43
      %s63 = sphi 0, %s63
      %s65 = sphi 0, %s63
      %s66 = sphi 0, %s65
      %s80 = sphi 0, %s66
      %s84 = sphi 0, %s84
      %s86 = sphi 0, %s84
      %s87 = sphi 0, %s86
      %s101 = sphi 0, %s87
      %s109 = sphi 0, %s111
      %s112 = sphi 0, %s109
      %s113 = sphi 0, %s112
      %s129 = sphi 0, %s113
    $region4: #{tpu_custom_call.1} parent=1 // loop_header_branch
      %18 = sbr.rel (%p16) target = $region8
    $region5: #{tpu_custom_call.1} parent=1 // loop_body
      %s20 = ssub.s32 %s15, 1
      %s21 = ssub.s32 %s15, 2
      %s28 = sadd.s32 1, %s23
      %p29 = scmp.ge.s32.totalorder %s28, 1
      %s30 = scalar_select %p29, 0, %s28
      %s31 = sadd.s32 1, %s22
      %s32 = scalar_select %p29, %s31, %s22
      %p33 = scmp.ge.s32.totalorder %s32, 2
      %s34 = scalar_select %p33, 0, %s32
      %s35 = ssub.s32 %s22, %s34
      %s36 = ssub.s32 %s23, %s30
      %s37 = sor.u32 %s35, %s36
      %p38 = scmp.eq.s32.totalorder %s37, 0
      %s40 = sadd.s32 %s39, 1
      %s41 = scalar_select %p38, %s39, %s40
      %p44 = pneg %p38
      %p45 = scmp.eq.s32.totalorder %s15, 1
      %p46 = por %p44, %p45
      %p47 = scmp.ne.s32.totalorder %s39, %s42
      %p48 = scmp.eq.s32.totalorder %s15, 0
      %p49 = por %p47, %p48
      %p50 = scmp.ne.s32.totalorder %s39, %s42
      %p51 = scmp.eq.s32.totalorder %s20, 1
      %p52 = por %p50, %p51
      %p53 = scmp.ne.s32.totalorder %s42, %s43
      %p54 = scmp.eq.s32.totalorder %s20, 0
      %p55 = por %p53, %p54
      %p56 = scmp.ne.s32.totalorder %s42, %s43
      %p57 = scmp.eq.s32.totalorder %s21, 1
      %p58 = por %p56, %p57
      %p60 = scmp.ne.s32.totalorder %s43, %s59
      %p61 = scmp.eq.s32.totalorder %s21, 0
      %p62 = por %p60, %p61
      %s64 = sadd.s32 %s63, 1
      %p67 = scmp.eq.s32.totalorder %s15, 1
      %p68 = scmp.ne.s32.totalorder %s63, %s65
      %p69 = scmp.eq.s32.totalorder %s15, 0
      %p70 = por %p68, %p69
      %p71 = scmp.ne.s32.totalorder %s63, %s65
      %p72 = scmp.eq.s32.totalorder %s20, 1
      %p73 = por %p71, %p72
      %p74 = scmp.ne.s32.totalorder %s65, %s66
      %p75 = scmp.eq.s32.totalorder %s20, 0
      %p76 = por %p74, %p75
      %p77 = scmp.ne.s32.totalorder %s65, %s66
      %p78 = scmp.eq.s32.totalorder %s21, 1
      %p79 = por %p77, %p78
      %p81 = scmp.ne.s32.totalorder %s66, %s80
      %p82 = scmp.eq.s32.totalorder %s21, 0
      %p83 = por %p81, %p82
      %s85 = sadd.s32 %s84, 1
      %p88 = scmp.eq.s32.totalorder %s15, 1
      %p89 = scmp.ne.s32.totalorder %s84, %s86
      %p90 = scmp.eq.s32.totalorder %s15, 0
      %p91 = por %p89, %p90
      %p92 = scmp.ne.s32.totalorder %s84, %s86
      %p93 = scmp.eq.s32.totalorder %s20, 1
      %p94 = por %p92, %p93
      %p95 = scmp.ne.s32.totalorder %s86, %s87
      %p96 = scmp.eq.s32.totalorder %s20, 0
      %p97 = por %p95, %p96
      %p98 = scmp.ne.s32.totalorder %s86, %s87
      %p99 = scmp.eq.s32.totalorder %s21, 1
      %p100 = por %p98, %p99
      %p102 = scmp.ne.s32.totalorder %s87, %s101
      %p103 = scmp.eq.s32.totalorder %s21, 0
      %p104 = por %p102, %p103
      %s105 = ssub.s32 %s22, %s34
      %s106 = ssub.s32 %s23, %s30
      %s107 = sor.u32 %s105, %s106
      %p108 = scmp.eq.s32.totalorder %s107, 0
      %s110 = sadd.s32 %s109, 1
      %s111 = scalar_select %p108, %s109, %s110
      %p114 = pneg %p108
      %p115 = scmp.eq.s32.totalorder %s15, 1
      %p116 = por %p114, %p115
      %p117 = scmp.ne.s32.totalorder %s109, %s112
      %p118 = scmp.eq.s32.totalorder %s15, 0
      %p119 = por %p117, %p118
      %p120 = scmp.ne.s32.totalorder %s109, %s112
      %p121 = scmp.eq.s32.totalorder %s20, 1
      %p122 = por %p120, %p121
      %p123 = scmp.ne.s32.totalorder %s112, %s113
      %p124 = scmp.eq.s32.totalorder %s20, 0
      %p125 = por %p123, %p124
      %p126 = scmp.ne.s32.totalorder %s112, %s113
      %p127 = scmp.eq.s32.totalorder %s21, 1
      %p128 = por %p126, %p127
      %p130 = scmp.ne.s32.totalorder %s113, %s129
      %p131 = scmp.eq.s32.totalorder %s21, 0
      %p132 = por %p130, %p131
      %p133 = scmp.le.s32.totalorder 1, %s15
      %p134 = scmp.lt.s32.totalorder %s15, 3
      %p135 = pnand %p133, %p134
      %p136 = pneg %p135
      // Predicated region
      $region9: #{tpu_custom_call.1} parent=5 // pred_check
        _
      $region10: #{tpu_custom_call.1} parent=5 // pred_check_branch
        %138 = sbr.rel (%p135) target = $region12
      $region11: #{tpu_custom_call.1} parent=5 // pred_region
        %s139 = ssub.s32 %s15, 1
        // Predicated region
        $region13: #{tpu_custom_call.1} parent=11 // pred_check
          %p140 = pneg %p76
        $region14: #{tpu_custom_call.1} parent=11 // pred_check_branch
          %142 = sbr.rel (%p140) target = $region16
        $region15: #{tpu_custom_call.1} parent=11 // pred_region
          _
        $region16: #{tpu_custom_call.1} parent=11 // pred_fallthru
          _
        // Predicated region
        $region17: #{tpu_custom_call.1} parent=11 // pred_check
          %p143 = pneg %p97
        $region18: #{tpu_custom_call.1} parent=11 // pred_check_branch
          %145 = sbr.rel (%p143) target = $region20
        $region19: #{tpu_custom_call.1} parent=11 // pred_region
          _
        $region20: #{tpu_custom_call.1} parent=11 // pred_fallthru
          _
      $region12: #{tpu_custom_call.1} parent=5 // pred_fallthru
        _
      %p146 = scmp.lt.s32.totalorder %s15, 2
      // Predicated region
      $region21: #{tpu_custom_call.1} parent=5 // pred_check
        %p147 = pneg %p146
      $region22: #{tpu_custom_call.1} parent=5 // pred_check_branch
        %149 = sbr.rel (%p147) target = $region24
      $region23: #{tpu_custom_call.1} parent=5 // pred_region
        // Predicated region
        $region25: #{tpu_custom_call.1} parent=23 // pred_check
          %p150 = pneg %p49
        $region26: #{tpu_custom_call.1} parent=23 // pred_check_branch
          %152 = sbr.rel (%p150) target = $region28
        $region27: #{tpu_custom_call.1} parent=23 // pred_region
          %s153 = sand.u32 %s39, 1
          %s154 = scalar_lea.sflag [#allocation4], %s153
          %s155 = sand.u32 %s39, 1
          %s156 = smul.addr %s155, 32
          %s157 = scalar_lea.vmem [#allocation3], %s156
          %s159 = ssub.s32 512, 512
          %160 = vsyncadd %s154, %s159
          %s161 = smul.addr %s23, 8
          %s162 = smul.addr %s22, 8
          %s163 = sadd.s32 %s161, %s162
          %s164 = smul.addr %s163, 64
          %s165 = scalar_lea.hbm %s0, %s164
          %s166 = sshll.u32 %s157, 4
          %s167 = int_to_ptr.vmem [resolvable:$true] %s166
          %172 = dma.hbm_to_vmem [thread:$0]  %s165, 512, %s167, %s154, 256, 256, 16
        $region28: #{tpu_custom_call.1} parent=23 // pred_fallthru
          _
      $region24: #{tpu_custom_call.1} parent=5 // pred_fallthru
        _
      %p173 = scmp.le.s32.totalorder 1, %s15
      %p174 = scmp.lt.s32.totalorder %s15, 3
      %p175 = pnand %p173, %p174
      %p176 = pneg %p175
      // Predicated region
      $region29: #{tpu_custom_call.1} parent=5 // pred_check
        _
      $region30: #{tpu_custom_call.1} parent=5 // pred_check_branch
        %178 = sbr.rel (%p175) target = $region32
      $region31: #{tpu_custom_call.1} parent=5 // pred_region
        %s179 = ssub.s32 %s15, 1
        %s180 = sand.u32 %s42, 1
        %s181 = scalar_lea.sflag [#allocation4], %s180
        %s182 = sand.u32 %s42, 1
        %s183 = smul.addr %s182, 32
        %s184 = scalar_lea.vmem [#allocation3], %s183
        // Predicated region
        $region33: #{tpu_custom_call.1} parent=31 // pred_check
          %p185 = pneg %p55
        $region34: #{tpu_custom_call.1} parent=31 // pred_check_branch
          %187 = sbr.rel (%p185) target = $region36
        $region35: #{tpu_custom_call.1} parent=31 // pred_region
          %188 = dma.done %s181, 512
        $region36: #{tpu_custom_call.1} parent=31 // pred_fallthru
          _
        %s189 = sand.u32 %s42, 1
        %s190 = scalar_lea.sflag [#allocation4], %s189
        %s191 = sand.u32 %s42, 1
        %s192 = smul.addr %s191, 32
        %s193 = scalar_lea.vmem [#allocation3], %s192
        %p194 = pneg %p55
        %p195 = pneg %p52
        %p196 = pneg %p76
        %p197 = pneg %p73
        %p198 = pneg %p97
        %p199 = pneg %p94
        %p200 = pneg %p125
        %p201 = pneg %p122
        %s202 = sand.u32 %s112, 1
        %s203 = scalar_lea.sflag [#allocation5], %s202
        %s204 = sand.u32 %s112, 1
        %s205 = smul.addr %s204, 48
        %s206 = scalar_lea.vmem [#allocation6], %s205
        %s207 = smul.u32 3, %s25
        %v209 = vld [vmem:[%s184] sm:$0xff]
        %v210 = vld [vmem:[%s184 + $0x8] sm:$0xf]
        %v211 = vld [vmem:[%s184 + $0x10] sm:$0xff]
        %v212 = vld [vmem:[%s184 + $0x18] sm:$0xf]
        %v217 = vunpack.c.l.b16 %v209
        %v218 = vunpack.c.h.b16 %v209
        %v219 = vunpack.c.l.b16 %v210
        %v220 = vunpack.c.l.b16 %v211
        %v221 = vunpack.c.h.b16 %v211
        %v222 = vunpack.c.l.b16 %v212
        %v223 = vpack.c.b16 %v220, %v217
        %v224 = vpack.c.b16 %v221, %v218
        %v225 = vpack.c.b16 %v222, %v219
        %229 = vst [vmem:[#allocation2] sm:$0xff] %v223
        %230 = vst [vmem:[#allocation2 + $0x8] sm:$0xff] %v224
        %231 = vst [vmem:[#allocation2 + $0x10] sm:$0xff] %v225
        %v232 = vld [vmem:[%s184] sm:$0xff]
        %v233 = vld [vmem:[%s184 + $0x8] sm:$0xff]
        %v234 = vld [vmem:[%s184 + $0x10] sm:$0xff]
        %v235 = vld [vmem:[%s184 + $0x18] sm:$0xff]
        %v240 = vunpack.c.l.b16 %v232
        %v241 = vunpack.c.h.b16 %v232
        %v242 = vunpack.c.l.b16 %v233
        %v243 = vunpack.c.h.b16 %v233
        %v244 = vunpack.c.l.b16 %v234
        %v245 = vunpack.c.h.b16 %v234
        %v246 = vunpack.c.l.b16 %v235
        %v247 = vunpack.c.h.b16 %v235
        %v248 = vpack.c.b16 %v244, %v240
        %v249 = vpack.c.b16 %v245, %v241
        %v250 = vpack.c.b16 %v246, %v242
        %v251 = vpack.c.b16 %v247, %v243
        %252 = vrot.lane.b32.xlu0 %v248, 127
        %v253 = vpop.permute.xlu0 %252
        %254 = vrot.lane.b32.xlu0 %v249, 127
        %v255 = vpop.permute.xlu0 %254
        %256 = vrot.lane.b32.xlu0 %v250, 127
        %v257 = vpop.permute.xlu0 %256
        %258 = vrot.lane.b32.xlu0 %v251, 127
        %v259 = vpop.permute.xlu0 %258
        %vm260 = vcmask 1039360
        %v261 = vsel %vm260, %v253, %v255
        %v262 = vsel %vm260, %v255, %v257
        %v263 = vsel %vm260, %v257, %v259
        %267 = vst [vmem:[#allocation2 + $0x18] sm:$0xff] %v261
        %268 = vst [vmem:[#allocation2 + $0x20] sm:$0xff] %v262
        %269 = vst [vmem:[#allocation2 + $0x28] sm:$0xff] %v263
        %v270 = vld [vmem:[%s184] sm:$0xff]
        %v271 = vld [vmem:[%s184 + $0x8] sm:$0xff]
        %v272 = vld [vmem:[%s184 + $0x10] sm:$0xff]
        %v273 = vld [vmem:[%s184 + $0x18] sm:$0xff]
        %v278 = vunpack.c.l.b16 %v270
        %v279 = vunpack.c.h.b16 %v270
        %v280 = vunpack.c.l.b16 %v271
        %v281 = vunpack.c.h.b16 %v271
        %v282 = vunpack.c.l.b16 %v272
        %v283 = vunpack.c.h.b16 %v272
        %v284 = vunpack.c.l.b16 %v273
        %v285 = vunpack.c.h.b16 %v273
        %v286 = vpack.c.b16 %v282, %v278
        %v287 = vpack.c.b16 %v283, %v279
        %v288 = vpack.c.b16 %v284, %v280
        %v289 = vpack.c.b16 %v285, %v281
        %290 = vrot.lane.b32.xlu0 %v286, 126
        %v291 = vpop.permute.xlu0 %290
        %292 = vrot.lane.b32.xlu0 %v287, 126
        %v293 = vpop.permute.xlu0 %292
        %294 = vrot.lane.b32.xlu0 %v288, 126
        %v295 = vpop.permute.xlu0 %294
        %296 = vrot.lane.b32.xlu0 %v289, 126
        %v297 = vpop.permute.xlu0 %296
        %vm298 = vcmask 1031168
        %v299 = vsel %vm298, %v291, %v293
        %v300 = vsel %vm298, %v293, %v295
        %v301 = vsel %vm298, %v295, %v297
        %305 = vst [vmem:[#allocation2 + $0x30] sm:$0xff] %v299
        %306 = vst [vmem:[#allocation2 + $0x38] sm:$0xff] %v300
        %307 = vst [vmem:[#allocation2 + $0x40] sm:$0xff] %v301
        %v308 = vld [vmem:[%s184] sm:$0xff]
        %v309 = vld [vmem:[%s184 + $0x8] sm:$0xff]
        %v310 = vld [vmem:[%s184 + $0x10] sm:$0xff]
        %v311 = vld [vmem:[%s184 + $0x18] sm:$0xff]
        %v316 = vunpack.c.l.b16 %v308
        %v317 = vunpack.c.h.b16 %v308
        %v318 = vunpack.c.l.b16 %v309
        %v319 = vunpack.c.h.b16 %v309
        %v320 = vunpack.c.l.b16 %v310
        %v321 = vunpack.c.h.b16 %v310
        %v322 = vunpack.c.l.b16 %v311
        %v323 = vunpack.c.h.b16 %v311
        %v324 = vpack.c.b16 %v320, %v316
        %v325 = vpack.c.b16 %v321, %v317
        %v326 = vpack.c.b16 %v322, %v318
        %v327 = vpack.c.b16 %v323, %v319
        %328 = vrot.lane.b32.xlu0 %v324, 110
        %v329 = vpop.permute.xlu0 %328
        %330 = vrot.lane.b32.xlu0 %v325, 110
        %v331 = vpop.permute.xlu0 %330
        %332 = vrot.lane.b32.xlu0 %v326, 110
        %v333 = vpop.permute.xlu0 %332
        %334 = vrot.lane.b32.xlu0 %v327, 110
        %v335 = vpop.permute.xlu0 %334
        %vm336 = vcmask 900096
        %v337 = vsel %vm336, %v329, %v331
        %v338 = vsel %vm336, %v331, %v333
        %v339 = vsel %vm336, %v333, %v335
        %343 = vst [vmem:[#allocation2 + $0x48] sm:$0xff] %v337
        %344 = vst [vmem:[#allocation2 + $0x50] sm:$0xff] %v338
        %345 = vst [vmem:[#allocation2 + $0x58] sm:$0xff] %v339
        %v346 = vld [vmem:[%s184] sm:$0xff]
        %v347 = vld [vmem:[%s184 + $0x8] sm:$0xff]
        %v348 = vld [vmem:[%s184 + $0x10] sm:$0xff]
        %v349 = vld [vmem:[%s184 + $0x18] sm:$0xff]
        %v354 = vunpack.c.l.b16 %v346
        %v355 = vunpack.c.h.b16 %v346
        %v356 = vunpack.c.l.b16 %v347
        %v357 = vunpack.c.h.b16 %v347
        %v358 = vunpack.c.l.b16 %v348
        %v359 = vunpack.c.h.b16 %v348
        %v360 = vunpack.c.l.b16 %v349
        %v361 = vunpack.c.h.b16 %v349
        %v362 = vpack.c.b16 %v358, %v354
        %v363 = vpack.c.b16 %v359, %v355
        %v364 = vpack.c.b16 %v360, %v356
        %v365 = vpack.c.b16 %v361, %v357
        %366 = vrot.lane.b32.xlu0 %v362, 109
        %v367 = vpop.permute.xlu0 %366
        %368 = vrot.lane.b32.xlu0 %v363, 109
        %v369 = vpop.permute.xlu0 %368
        %370 = vrot.lane.b32.xlu0 %v364, 109
        %v371 = vpop.permute.xlu0 %370
        %372 = vrot.lane.b32.xlu0 %v365, 109
        %v373 = vpop.permute.xlu0 %372
        %vm374 = vcmask 891904
        %v375 = vsel %vm374, %v367, %v369
        %v376 = vsel %vm374, %v369, %v371
        %v377 = vsel %vm374, %v371, %v373
        %381 = vst [vmem:[#allocation2 + $0x60] sm:$0xff] %v375
        %382 = vst [vmem:[#allocation2 + $0x68] sm:$0xff] %v376
        %383 = vst [vmem:[#allocation2 + $0x70] sm:$0xff] %v377
        %v384 = vld [vmem:[%s184] sm:$0xff]
        %v385 = vld [vmem:[%s184 + $0x8] sm:$0xff]
        %v386 = vld [vmem:[%s184 + $0x10] sm:$0xff]
        %v387 = vld [vmem:[%s184 + $0x18] sm:$0xff]
        %v392 = vunpack.c.l.b16 %v384
        %v393 = vunpack.c.h.b16 %v384
        %v394 = vunpack.c.l.b16 %v385
        %v395 = vunpack.c.h.b16 %v385
        %v396 = vunpack.c.l.b16 %v386
        %v397 = vunpack.c.h.b16 %v386
        %v398 = vunpack.c.l.b16 %v387
        %v399 = vunpack.c.h.b16 %v387
        %v400 = vpack.c.b16 %v396, %v392
        %v401 = vpack.c.b16 %v397, %v393
        %v402 = vpack.c.b16 %v398, %v394
        %v403 = vpack.c.b16 %v399, %v395
        %404 = vrot.lane.b32.xlu0 %v400, 108
        %v405 = vpop.permute.xlu0 %404
        %406 = vrot.lane.b32.xlu0 %v401, 108
        %v407 = vpop.permute.xlu0 %406
        %408 = vrot.lane.b32.xlu0 %v402, 108
        %v409 = vpop.permute.xlu0 %408
        %410 = vrot.lane.b32.xlu0 %v403, 108
        %v411 = vpop.permute.xlu0 %410
        %vm412 = vcmask 883712
        %v413 = vsel %vm412, %v405, %v407
        %v414 = vsel %vm412, %v407, %v409
        %v415 = vsel %vm412, %v409, %v411
        %419 = vst [vmem:[#allocation2 + $0x78] sm:$0xff] %v413
        %420 = vst [vmem:[#allocation2 + $0x80] sm:$0xff] %v414
        %421 = vst [vmem:[#allocation2 + $0x88] sm:$0xff] %v415
        %v422 = vld [vmem:[%s184] sm:$0xff]
        %v423 = vld [vmem:[%s184 + $0x8] sm:$0xff]
        %v424 = vld [vmem:[%s184 + $0x10] sm:$0xff]
        %v425 = vld [vmem:[%s184 + $0x18] sm:$0xff]
        %v430 = vunpack.c.l.b16 %v422
        %v431 = vunpack.c.h.b16 %v422
        %v432 = vunpack.c.l.b16 %v423
        %v433 = vunpack.c.h.b16 %v423
        %v434 = vunpack.c.l.b16 %v424
        %v435 = vunpack.c.h.b16 %v424
        %v436 = vunpack.c.l.b16 %v425
        %v437 = vunpack.c.h.b16 %v425
        %v438 = vpack.c.b16 %v434, %v430
        %v439 = vpack.c.b16 %v435, %v431
        %v440 = vpack.c.b16 %v436, %v432
        %v441 = vpack.c.b16 %v437, %v433
        %442 = vrot.lane.b32.xlu0 %v438, 92
        %v443 = vpop.permute.xlu0 %442
        %444 = vrot.lane.b32.xlu0 %v439, 92
        %v445 = vpop.permute.xlu0 %444
        %446 = vrot.lane.b32.xlu0 %v440, 92
        %v447 = vpop.permute.xlu0 %446
        %448 = vrot.lane.b32.xlu0 %v441, 92
        %v449 = vpop.permute.xlu0 %448
        %vm450 = vcmask 752640
        %v451 = vsel %vm450, %v443, %v445
        %v452 = vsel %vm450, %v445, %v447
        %v453 = vsel %vm450, %v447, %v449
        %457 = vst [vmem:[#allocation2 + $0x90] sm:$0xff] %v451
        %458 = vst [vmem:[#allocation2 + $0x98] sm:$0xff] %v452
        %459 = vst [vmem:[#allocation2 + $0xa0] sm:$0xff] %v453
        %v460 = vld [vmem:[%s184] sm:$0xff]
        %v461 = vld [vmem:[%s184 + $0x8] sm:$0xff]
        %v462 = vld [vmem:[%s184 + $0x10] sm:$0xff]
        %v463 = vld [vmem:[%s184 + $0x18] sm:$0xff]
        %v468 = vunpack.c.l.b16 %v460
        %v469 = vunpack.c.h.b16 %v460
        %v470 = vunpack.c.l.b16 %v461
        %v471 = vunpack.c.h.b16 %v461
        %v472 = vunpack.c.l.b16 %v462
        %v473 = vunpack.c.h.b16 %v462
        %v474 = vunpack.c.l.b16 %v463
        %v475 = vunpack.c.h.b16 %v463
        %v476 = vpack.c.b16 %v472, %v468
        %v477 = vpack.c.b16 %v473, %v469
        %v478 = vpack.c.b16 %v474, %v470
        %v479 = vpack.c.b16 %v475, %v471
        %480 = vrot.lane.b32.xlu0 %v476, 91
        %v481 = vpop.permute.xlu0 %480
        %482 = vrot.lane.b32.xlu0 %v477, 91
        %v483 = vpop.permute.xlu0 %482
        %484 = vrot.lane.b32.xlu0 %v478, 91
        %v485 = vpop.permute.xlu0 %484
        %486 = vrot.lane.b32.xlu0 %v479, 91
        %v487 = vpop.permute.xlu0 %486
        %vm488 = vcmask 744448
        %v489 = vsel %vm488, %v481, %v483
        %v490 = vsel %vm488, %v483, %v485
        %v491 = vsel %vm488, %v485, %v487
        %495 = vst [vmem:[#allocation2 + $0xa8] sm:$0xff] %v489
        %496 = vst [vmem:[#allocation2 + $0xb0] sm:$0xff] %v490
        %497 = vst [vmem:[#allocation2 + $0xb8] sm:$0xff] %v491
        %v498 = vld [vmem:[%s184] sm:$0xff]
        %v499 = vld [vmem:[%s184 + $0x8] sm:$0xff]
        %v500 = vld [vmem:[%s184 + $0x10] sm:$0xff]
        %v501 = vld [vmem:[%s184 + $0x18] sm:$0xff]
        %v506 = vunpack.c.l.b16 %v498
        %v507 = vunpack.c.h.b16 %v498
        %v508 = vunpack.c.l.b16 %v499
        %v509 = vunpack.c.h.b16 %v499
        %v510 = vunpack.c.l.b16 %v500
        %v511 = vunpack.c.h.b16 %v500
        %v512 = vunpack.c.l.b16 %v501
        %v513 = vunpack.c.h.b16 %v501
        %v514 = vpack.c.b16 %v510, %v506
        %v515 = vpack.c.b16 %v511, %v507
        %v516 = vpack.c.b16 %v512, %v508
        %v517 = vpack.c.b16 %v513, %v509
        %518 = vrot.lane.b32.xlu0 %v514, 90
        %v519 = vpop.permute.xlu0 %518
        %520 = vrot.lane.b32.xlu0 %v515, 90
        %v521 = vpop.permute.xlu0 %520
        %522 = vrot.lane.b32.xlu0 %v516, 90
        %v523 = vpop.permute.xlu0 %522
        %524 = vrot.lane.b32.xlu0 %v517, 90
        %v525 = vpop.permute.xlu0 %524
        %vm526 = vcmask 736256
        %v527 = vsel %vm526, %v519, %v521
        %v528 = vsel %vm526, %v521, %v523
        %v529 = vsel %vm526, %v523, %v525
        %533 = vst [vmem:[#allocation2 + $0xc0] sm:$0xff] %v527
        %534 = vst [vmem:[#allocation2 + $0xc8] sm:$0xff] %v528
        %535 = vst [vmem:[#allocation2 + $0xd0] sm:$0xff] %v529
        %v536 = vld [vmem:[%s1] sm:$0xff]
        %v537 = vld [vmem:[%s1 + $0x8] sm:$0xff]
        %v538 = vld [vmem:[#allocation2] sm:$0xff]
        %v539 = vld [vmem:[#allocation2 + $0x8] sm:$0xff]
        %v540 = vld [vmem:[#allocation2 + $0x10] sm:$0xff]
        %v541 = vld [vmem:[#allocation2 + $0x18] sm:$0xff]
        %v542 = vld [vmem:[#allocation2 + $0x20] sm:$0xff]
        %v543 = vld [vmem:[#allocation2 + $0x28] sm:$0xff]
        %v544 = vld [vmem:[#allocation2 + $0x30] sm:$0xff]
        %v545 = vld [vmem:[#allocation2 + $0x38] sm:$0xff]
        %v546 = vld [vmem:[#allocation2 + $0x40] sm:$0xff]
        %v547 = vld [vmem:[#allocation2 + $0x48] sm:$0xff]
        %v548 = vld [vmem:[#allocation2 + $0x50] sm:$0xff]
        %v549 = vld [vmem:[#allocation2 + $0x58] sm:$0xff]
        %v550 = vld [vmem:[#allocation2 + $0x60] sm:$0xff]
        %v551 = vld [vmem:[#allocation2 + $0x68] sm:$0xff]
        %v552 = vld [vmem:[#allocation2 + $0x70] sm:$0xff]
        %v553 = vld [vmem:[#allocation2 + $0x78] sm:$0xff]
        %v554 = vld [vmem:[#allocation2 + $0x80] sm:$0xff]
        %v555 = vld [vmem:[#allocation2 + $0x88] sm:$0xff]
        %v556 = vld [vmem:[#allocation2 + $0x90] sm:$0xff]
        %v557 = vld [vmem:[#allocation2 + $0x98] sm:$0xff]
        %v558 = vld [vmem:[#allocation2 + $0xa0] sm:$0xff]
        %v559 = vld [vmem:[#allocation2 + $0xa8] sm:$0xff]
        %v560 = vld [vmem:[#allocation2 + $0xb0] sm:$0xff]
        %v561 = vld [vmem:[#allocation2 + $0xb8] sm:$0xff]
        %v562 = vld [vmem:[#allocation2 + $0xc0] sm:$0xff]
        %v563 = vld [vmem:[#allocation2 + $0xc8] sm:$0xff]
        %v564 = vld [vmem:[#allocation2 + $0xd0] sm:$0xff]
        %v565 = vld [vmem:[%s2] sm:$0xff]
        %v566 = vld [vmem:[%s2 + $0x8] sm:$0xff]
        %568 = vset.pattern.permute.xlu0 0
        %569 = vperm.xlu0 %568, %v565
        %v570 = vpop.permute.xlu0 %569
        %573 = vset.pattern.permute.xlu0 0
        %574 = vperm.xlu0 %573, %v566
        %v575 = vpop.permute.xlu0 %574
        %v579 = vunpack.c.l.b16 %v536
        %v580 = vunpack.c.h.b16 %v536
        %v581 = vunpack.c.l.b16 %v537
        %v582 = vunpack.c.h.b16 %v537
        %v583 = vpack.c.b16 %v581, %v579
        %v584 = vpack.c.b16 %v582, %v580
        %vm586 = vcmask 130048
        %v588 = vsel %vm586, %v584, 0
        %590 = vmatprep.subr.bf16.mxu0 %v539
        %591 = vmatpush1.bf16.msra.mxu0 %v538
        %592 = vmatprep.subr.bf16.mxu0 %v542
        %593 = vmatpush1.bf16.msra.mxu0 %v541
        %594 = vmatprep.subr.bf16.mxu0 %v545
        %595 = vmatpush1.bf16.msra.mxu0 %v544
        %596 = vmatprep.subr.bf16.mxu0 %v548
        %597 = vmatpush1.bf16.msra.mxu0 %v547
        %598 = vmatprep.subr.bf16.mxu0 %v551
        %599 = vmatpush1.bf16.msra.mxu0 %v550
        %600 = vmatprep.subr.bf16.mxu0 %v554
        %601 = vmatpush1.bf16.msra.mxu0 %v553
        %602 = vmatprep.subr.bf16.mxu0 %v557
        %603 = vmatpush1.bf16.msra.mxu0 %v556
        %604 = vmatprep.subr.bf16.mxu0 %v560
        %605 = vmatpush1.bf16.msra.mxu0 %v559
        %606 = vmatprep.subr.bf16.mxu0 %v563
        %607 = vmatpush1.bf16.msra.mxu0 %v562
        %608 = vmatprep.subr.bf16.mxu0 0
        %609 = vmatpush1.bf16.msra.mxu0 0
        %610 = vmatprep.subr.bf16.mxu0 0
        %611 = vmatpush1.bf16.msra.mxu0 0
        %612 = vmatprep.subr.bf16.mxu0 0
        %613 = vmatpush1.bf16.msra.mxu0 0
        %614 = vmatprep.subr.bf16.mxu0 0
        %615 = vmatpush1.bf16.msra.mxu0 0
        %616 = vmatprep.subr.bf16.mxu0 0
        %617 = vmatpush1.bf16.msra.mxu0 0
        %618 = vmatprep.subr.bf16.mxu0 0
        %619 = vmatpush1.bf16.msra.mxu0 0
        %620 = vmatprep.subr.bf16.mxu0 0
        %621 = vmatpush1.bf16.msra.mxu0 0
        %622 = vmatprep.mubr.bf16.mxu0 %v588
        %623 = vmatmul.mubr.bf16.gmra.mrb[0].mxu0 %v583
        %v624 = vpop.f32.mrb[0].mxu0
        %v625 = vadd.f32 %v570, %v624
        %v626 = vpop.f32.mrb[0].mxu0
        %v627 = vadd.f32 %v570, %v626
        %v628 = vpop.f32.mrb[0].mxu0
        %v629 = vadd.f32 %v575, %v628
        %v630 = vpop.f32.mrb[0].mxu0
        %v631 = vadd.f32 %v575, %v630
        %632 = vdwg.mxu0
        %633 = vmatprep.subr.bf16.mxu0 0
        %634 = vmatpush1.bf16.msra.mxu0 %v540
        %635 = vmatprep.subr.bf16.mxu0 0
        %636 = vmatpush1.bf16.msra.mxu0 %v543
        %637 = vmatprep.subr.bf16.mxu0 0
        %638 = vmatpush1.bf16.msra.mxu0 %v546
        %639 = vmatprep.subr.bf16.mxu0 0
        %640 = vmatpush1.bf16.msra.mxu0 %v549
        %641 = vmatprep.subr.bf16.mxu0 0
        %642 = vmatpush1.bf16.msra.mxu0 %v552
        %643 = vmatprep.subr.bf16.mxu0 0
        %644 = vmatpush1.bf16.msra.mxu0 %v555
        %645 = vmatprep.subr.bf16.mxu0 0
        %646 = vmatpush1.bf16.msra.mxu0 %v558
        %647 = vmatprep.subr.bf16.mxu0 0
        %648 = vmatpush1.bf16.msra.mxu0 %v561
        %649 = vmatprep.subr.bf16.mxu0 0
        %650 = vmatpush1.bf16.msra.mxu0 %v564
        %651 = vmatprep.subr.bf16.mxu0 0
        %652 = vmatpush1.bf16.msra.mxu0 0
        %653 = vmatprep.subr.bf16.mxu0 0
        %654 = vmatpush1.bf16.msra.mxu0 0
        %655 = vmatprep.subr.bf16.mxu0 0
        %656 = vmatpush1.bf16.msra.mxu0 0
        %657 = vmatprep.subr.bf16.mxu0 0
        %658 = vmatpush1.bf16.msra.mxu0 0
        %659 = vmatprep.subr.bf16.mxu0 0
        %660 = vmatpush1.bf16.msra.mxu0 0
        %661 = vmatprep.subr.bf16.mxu0 0
        %662 = vmatpush1.bf16.msra.mxu0 0
        %663 = vmatprep.subr.bf16.mxu0 0
        %664 = vmatpush1.bf16.msra.mxu0 0
        %665 = vmatprep.mubr.bf16.mxu0 %v588
        %666 = vmatmul.mubr.bf16.gmra.mrb[0].mxu0 %v583
        %v667 = vpop.f32.mrb[0].mxu0
        %v668 = vadd.f32 %v570, %v667
        %v669 = vpop.f32.mrb[0].mxu0
        %v670 = vpop.f32.mrb[0].mxu0
        %v671 = vadd.f32 %v575, %v670
        %v672 = vpop.f32.mrb[0].mxu0
        %673 = vdwg.mxu0
        %674 = vst [vmem:[%s206] sm:$0xff] %v625
        %675 = vst [vmem:[%s206 + $0x8] sm:$0xff] %v627
        %676 = vst [vmem:[%s206 + $0x10] sm:$0xff] %v668
        %677 = vst [vmem:[%s206 + $0x18] sm:$0xff] %v629
        %678 = vst [vmem:[%s206 + $0x20] sm:$0xff] %v631
        %679 = vst [vmem:[%s206 + $0x28] sm:$0xff] %v671
        %s680 = sand.u32 %s112, 1
        %s681 = scalar_lea.sflag [#allocation5], %s680
        %s682 = sand.u32 %s112, 1
        %s683 = smul.addr %s682, 48
        %s684 = scalar_lea.vmem [#allocation6], %s683
        // Predicated region
        $region37: #{tpu_custom_call.1} parent=31 // pred_check
          %p685 = pneg %p122
        $region38: #{tpu_custom_call.1} parent=31 // pred_check_branch
          %687 = sbr.rel (%p685) target = $region40
        $region39: #{tpu_custom_call.1} parent=31 // pred_region
          %s688 = smul.u32 3, %s25
          %s690 = ssub.s32 768, 768
          %691 = vsyncadd %s681, %s690
          %s692 = smul.addr %s24, 6
          %s693 = sadd.s32 %s688, %s692
          %s694 = smul.addr %s693, 128
          %s695 = scalar_lea.hbm %s3, %s694
          %s696 = sshll.u32 %s684, 4
          %s697 = int_to_ptr.vmem [resolvable:$true] %s696
          %702 = dma.vmem_to_hbm [thread:$0]  %s697, 768, %s695, %s681, 384, 384, 24
        $region40: #{tpu_custom_call.1} parent=31 // pred_fallthru
          _
      $region32: #{tpu_custom_call.1} parent=5 // pred_fallthru
        _
      %p703 = scmp.le.s32.totalorder 2, %s15
      // Predicated region
      $region41: #{tpu_custom_call.1} parent=5 // pred_check
        %p704 = pneg %p703
      $region42: #{tpu_custom_call.1} parent=5 // pred_check_branch
        %706 = sbr.rel (%p704) target = $region44
      $region43: #{tpu_custom_call.1} parent=5 // pred_region
        %s707 = ssub.s32 %s15, 2
        // Predicated region
        $region45: #{tpu_custom_call.1} parent=43 // pred_check
          %p708 = pneg %p128
        $region46: #{tpu_custom_call.1} parent=43 // pred_check_branch
          %710 = sbr.rel (%p708) target = $region48
        $region47: #{tpu_custom_call.1} parent=43 // pred_region
          %s711 = sand.u32 %s113, 1
          %s712 = scalar_lea.sflag [#allocation5], %s711
          %s713 = sand.u32 %s113, 1
          %s714 = smul.addr %s713, 48
          %s715 = scalar_lea.vmem [#allocation6], %s714
          %716 = dma.done %s712, 768
        $region48: #{tpu_custom_call.1} parent=43 // pred_fallthru
          _
      $region44: #{tpu_custom_call.1} parent=5 // pred_fallthru
        _
    $region6: #{tpu_custom_call.1} parent=1 // loop_footer
      %s19 = sadd.s32 1, %s15
    $region7: #{tpu_custom_call.1} parent=1 // loop_footer_branch
      %14 = sbr.rel target = $region3
    $region8: #{tpu_custom_call.1} parent=1 // loop_exit
      _
    %717 = vsyncpa [#allocation4], 1
    %s718 = scalar_lea.sflag [#allocation4], 1
    %719 = vsyncpa %s718, 1
    %720 = vsyncpa [#allocation5], 1
    %s721 = scalar_lea.sflag [#allocation5], 1
    %722 = vsyncpa %s721, 1

// kernel: tpu_custom_call.1
$region0: #{tpu_custom_call.1}
  #allocation0 [shape = 'u32[]', space=smem, size = 0x4, offset = 0x4, fixed_abs, tag = 'smem constant byte address 0x4 - core index']
  #allocation1 [shape = 'u32[144,128]{1,0:T(1,128)}', space=vmem, size = 0x12000, scoped, tag = 'internal scratch']
  #allocation2 [shape = 'bf16[144,384]{1,0:T(16,128)(2,1)}', space=vmem, size = 0x1b000, scoped, tag = 'scratch operand']
  %s0 = inlined_call_operand.hbm [shape: bf16[2,1,16,512], index: 0, kind: input, shape index: {}]
  %s1 = inlined_call_operand.vmem [shape: bf16[16,144], index: 1, kind: input, shape index: {}]
  %s2 = inlined_call_operand.vmem [shape: f32[16,1], index: 2, kind: input, shape index: {}]
  %s3 = inlined_call_operand.hbm [shape: f32[2,16,384], index: 3, kind: output, shape index: {}]
  %s4 = sld [smem:[#allocation0]]
  $region49: #{tpu_custom_call.1} parent=0
    _
  %s6 = ssub.s32 1, %s4
  %s7 = scalar_select 0, %s6, %s4
  $region1: #{tpu_custom_call.1} parent=0
    #allocation3 [shape = 'u8[32768]{0}', space=vmem, size = 0x8000, scoped, tag = 'input window, operand 0']
    #allocation4 [shape = 's32[2]{0}', space=sflag, size = 0x8, scoped, tag = 'scoped memory for tpu_custom_call.1']
    #allocation5 [shape = 's32[2]{0}', space=sflag, size = 0x8, scoped, tag = 'scoped memory for tpu_custom_call.1']
    #allocation6 [shape = 'u8[49152]{0}', space=vmem, size = 0xc000, scoped, tag = 'output window, operand 0']
    %8 = vsyncpa [#allocation4], 0
    %s9 = scalar_lea.sflag [#allocation4], 1
    %10 = vsyncpa %s9, 0
    %11 = vsyncpa [#allocation5], 0
    %s12 = scalar_lea.sflag [#allocation5], 1
    %13 = vsyncpa %s12, 0
    loop: start=0, step=1, limit=4
    $region2: #{tpu_custom_call.1} parent=1 // loop_pre_header
      _
    $region3: #{tpu_custom_call.1} parent=1 // loop_header
      %s15 = sphi 0, %s19
      %p16 = scmp.ge.s32.totalorder %s15, 4
      %s22 = sphi 0, %s34
      %s23 = sphi 0, %s30
      %s24 = sphi 0, %s22
      %s25 = sphi 0, %s23
      %s26 = sphi 0, %s24
      %s27 = sphi 0, %s25
      %s39 = sphi 0, %s41
      %s42 = sphi 0, %s39
      %s43 = sphi 0, %s42
      %s59 = sphi 0, %s43
      %s63 = sphi 0, %s63
      %s65 = sphi 0, %s63
      %s66 = sphi 0, %s65
      %s80 = sphi 0, %s66
      %s84 = sphi 0, %s84
      %s86 = sphi 0, %s84
      %s87 = sphi 0, %s86
      %s101 = sphi 0, %s87
      %s109 = sphi 0, %s111
      %s112 = sphi 0, %s109
      %s113 = sphi 0, %s112
      %s129 = sphi 0, %s113
    $region4: #{tpu_custom_call.1} parent=1 // loop_header_branch
      %18 = sbr.rel (%p16) target = $region8
    $region5: #{tpu_custom_call.1} parent=1 // loop_body
      %s20 = ssub.s32 %s15, 1
      %s21 = ssub.s32 %s15, 2
      %s28 = sadd.s32 1, %s23
      %p29 = scmp.ge.s32.totalorder %s28, 1
      %s30 = scalar_select %p29, 0, %s28
      %s31 = sadd.s32 1, %s22
      %s32 = scalar_select %p29, %s31, %s22
      %p33 = scmp.ge.s32.totalorder %s32, 2
      %s34 = scalar_select %p33, 0, %s32
      %s35 = ssub.s32 %s22, %s34
      %s36 = ssub.s32 %s23, %s30
      %s37 = sor.u32 %s35, %s36
      %p38 = scmp.eq.s32.totalorder %s37, 0
      %s40 = sadd.s32 %s39, 1
      %s41 = scalar_select %p38, %s39, %s40
      %p44 = pneg %p38
      %p45 = scmp.eq.s32.totalorder %s15, 1
      %p46 = por %p44, %p45
      %p47 = scmp.ne.s32.totalorder %s39, %s42
      %p48 = scmp.eq.s32.totalorder %s15, 0
      %p49 = por %p47, %p48
      %p50 = scmp.ne.s32.totalorder %s39, %s42
      %p51 = scmp.eq.s32.totalorder %s20, 1
      %p52 = por %p50, %p51
      %p53 = scmp.ne.s32.totalorder %s42, %s43
      %p54 = scmp.eq.s32.totalorder %s20, 0
      %p55 = por %p53, %p54
      %p56 = scmp.ne.s32.totalorder %s42, %s43
      %p57 = scmp.eq.s32.totalorder %s21, 1
      %p58 = por %p56, %p57
      %p60 = scmp.ne.s32.totalorder %s43, %s59
      %p61 = scmp.eq.s32.totalorder %s21, 0
      %p62 = por %p60, %p61
      %s64 = sadd.s32 %s63, 1
      %p67 = scmp.eq.s32.totalorder %s15, 1
      %p68 = scmp.ne.s32.totalorder %s63, %s65
      %p69 = scmp.eq.s32.totalorder %s15, 0
      %p70 = por %p68, %p69
      %p71 = scmp.ne.s32.totalorder %s63, %s65
      %p72 = scmp.eq.s32.totalorder %s20, 1
      %p73 = por %p71, %p72
      %p74 = scmp.ne.s32.totalorder %s65, %s66
      %p75 = scmp.eq.s32.totalorder %s20, 0
      %p76 = por %p74, %p75
      %p77 = scmp.ne.s32.totalorder %s65, %s66
      %p78 = scmp.eq.s32.totalorder %s21, 1
      %p79 = por %p77, %p78
      %p81 = scmp.ne.s32.totalorder %s66, %s80
      %p82 = scmp.eq.s32.totalorder %s21, 0
      %p83 = por %p81, %p82
      %s85 = sadd.s32 %s84, 1
      %p88 = scmp.eq.s32.totalorder %s15, 1
      %p89 = scmp.ne.s32.totalorder %s84, %s86
      %p90 = scmp.eq.s32.totalorder %s15, 0
      %p91 = por %p89, %p90
      %p92 = scmp.ne.s32.totalorder %s84, %s86
      %p93 = scmp.eq.s32.totalorder %s20, 1
      %p94 = por %p92, %p93
      %p95 = scmp.ne.s32.totalorder %s86, %s87
      %p96 = scmp.eq.s32.totalorder %s20, 0
      %p97 = por %p95, %p96
      %p98 = scmp.ne.s32.totalorder %s86, %s87
      %p99 = scmp.eq.s32.totalorder %s21, 1
      %p100 = por %p98, %p99
      %p102 = scmp.ne.s32.totalorder %s87, %s101
      %p103 = scmp.eq.s32.totalorder %s21, 0
      %p104 = por %p102, %p103
      %s105 = ssub.s32 %s22, %s34
      %s106 = ssub.s32 %s23, %s30
      %s107 = sor.u32 %s105, %s106
      %p108 = scmp.eq.s32.totalorder %s107, 0
      %s110 = sadd.s32 %s109, 1
      %s111 = scalar_select %p108, %s109, %s110
      %p114 = pneg %p108
      %p115 = scmp.eq.s32.totalorder %s15, 1
      %p116 = por %p114, %p115
      %p117 = scmp.ne.s32.totalorder %s109, %s112
      %p118 = scmp.eq.s32.totalorder %s15, 0
      %p119 = por %p117, %p118
      %p120 = scmp.ne.s32.totalorder %s109, %s112
      %p121 = scmp.eq.s32.totalorder %s20, 1
      %p122 = por %p120, %p121
      %p123 = scmp.ne.s32.totalorder %s112, %s113
      %p124 = scmp.eq.s32.totalorder %s20, 0
      %p125 = por %p123, %p124
      %p126 = scmp.ne.s32.totalorder %s112, %s113
      %p127 = scmp.eq.s32.totalorder %s21, 1
      %p128 = por %p126, %p127
      %p130 = scmp.ne.s32.totalorder %s113, %s129
      %p131 = scmp.eq.s32.totalorder %s21, 0
      %p132 = por %p130, %p131
      %p133 = scmp.le.s32.totalorder 1, %s15
      %p134 = scmp.lt.s32.totalorder %s15, 3
      %p135 = pnand %p133, %p134
      %p136 = pneg %p135
      // Predicated region
      $region9: #{tpu_custom_call.1} parent=5 // pred_check
        _
      $region10: #{tpu_custom_call.1} parent=5 // pred_check_branch
        %138 = sbr.rel (%p135) target = $region12
      $region11: #{tpu_custom_call.1} parent=5 // pred_region
        %s139 = ssub.s32 %s15, 1
        // Predicated region
        $region13: #{tpu_custom_call.1} parent=11 // pred_check
          %p140 = pneg %p76
        $region14: #{tpu_custom_call.1} parent=11 // pred_check_branch
          %142 = sbr.rel (%p140) target = $region16
        $region15: #{tpu_custom_call.1} parent=11 // pred_region
          _
        $region16: #{tpu_custom_call.1} parent=11 // pred_fallthru
          _
        // Predicated region
        $region17: #{tpu_custom_call.1} parent=11 // pred_check
          %p143 = pneg %p97
        $region18: #{tpu_custom_call.1} parent=11 // pred_check_branch
          %145 = sbr.rel (%p143) target = $region20
        $region19: #{tpu_custom_call.1} parent=11 // pred_region
          _
        $region20: #{tpu_custom_call.1} parent=11 // pred_fallthru
          _
      $region12: #{tpu_custom_call.1} parent=5 // pred_fallthru
        _
      %p146 = scmp.lt.s32.totalorder %s15, 2
      // Predicated region
      $region21: #{tpu_custom_call.1} parent=5 // pred_check
        %p147 = pneg %p146
      $region22: #{tpu_custom_call.1} parent=5 // pred_check_branch
        %149 = sbr.rel (%p147) target = $region24
      $region23: #{tpu_custom_call.1} parent=5 // pred_region
        // Predicated region
        $region25: #{tpu_custom_call.1} parent=23 // pred_check
          %p150 = pneg %p49
        $region26: #{tpu_custom_call.1} parent=23 // pred_check_branch
          %152 = sbr.rel (%p150) target = $region28
        $region27: #{tpu_custom_call.1} parent=23 // pred_region
          %s153 = sand.u32 %s39, 1
          %s154 = scalar_lea.sflag [#allocation4], %s153
          %s155 = sand.u32 %s39, 1
          %s156 = smul.addr %s155, 32
          %s157 = scalar_lea.vmem [#allocation3], %s156
          %s159 = ssub.s32 512, 512
          %160 = vsyncadd %s154, %s159
          %s161 = smul.addr %s23, 8
          %s162 = smul.addr %s22, 8
          %s163 = sadd.s32 %s161, %s162
          %s164 = smul.addr %s163, 64
          %s165 = scalar_lea.hbm %s0, %s164
          %s166 = sshll.u32 %s157, 4
          %s167 = int_to_ptr.vmem [resolvable:$true] %s166
          %172 = dma.hbm_to_vmem [thread:$0]  %s165, 512, %s167, %s154, 256, 256, 16
        $region28: #{tpu_custom_call.1} parent=23 // pred_fallthru
          _
      $region24: #{tpu_custom_call.1} parent=5 // pred_fallthru
        _
      %p173 = scmp.le.s32.totalorder 1, %s15
      %p174 = scmp.lt.s32.totalorder %s15, 3
      %p175 = pnand %p173, %p174
      %p176 = pneg %p175
      // Predicated region
      $region29: #{tpu_custom_call.1} parent=5 // pred_check
        _
      $region30: #{tpu_custom_call.1} parent=5 // pred_check_branch
        %178 = sbr.rel (%p175) target = $region32
      $region31: #{tpu_custom_call.1} parent=5 // pred_region
        %s179 = ssub.s32 %s15, 1
        %s180 = sand.u32 %s42, 1
        %s181 = scalar_lea.sflag [#allocation4], %s180
        %s182 = sand.u32 %s42, 1
        %s183 = smul.addr %s182, 32
        %s184 = scalar_lea.vmem [#allocation3], %s183
        // Predicated region
        $region33: #{tpu_custom_call.1} parent=31 // pred_check
          %p185 = pneg %p55
        $region34: #{tpu_custom_call.1} parent=31 // pred_check_branch
          %187 = sbr.rel (%p185) target = $region36
        $region35: #{tpu_custom_call.1} parent=31 // pred_region
          %188 = dma.done %s181, 512
        $region36: #{tpu_custom_call.1} parent=31 // pred_fallthru
          _
        %s189 = sand.u32 %s42, 1
        %s190 = scalar_lea.sflag [#allocation4], %s189
        %s191 = sand.u32 %s42, 1
        %s192 = smul.addr %s191, 32
        %s193 = scalar_lea.vmem [#allocation3], %s192
        %p194 = pneg %p55
        %p195 = pneg %p52
        %p196 = pneg %p76
        %p197 = pneg %p73
        %p198 = pneg %p97
        %p199 = pneg %p94
        %p200 = pneg %p125
        %p201 = pneg %p122
        %s202 = sand.u32 %s112, 1
        %s203 = scalar_lea.sflag [#allocation5], %s202
        %s204 = sand.u32 %s112, 1
        %s205 = smul.addr %s204, 48
        %s206 = scalar_lea.vmem [#allocation6], %s205
        %s207 = smul.u32 3, %s25
        %v209 = vld [vmem:[%s184] sm:$0xff]
        %v210 = vld [vmem:[%s184 + $0x8] sm:$0xf]
        %v211 = vld [vmem:[%s184 + $0x10] sm:$0xff]
        %v212 = vld [vmem:[%s184 + $0x18] sm:$0xf]
        %v217 = vunpack.c.l.b16 %v209
        %v218 = vunpack.c.h.b16 %v209
        %v219 = vunpack.c.l.b16 %v210
        %v220 = vunpack.c.l.b16 %v211
        %v221 = vunpack.c.h.b16 %v211
        %v222 = vunpack.c.l.b16 %v212
        %v223 = vpack.c.b16 %v220, %v217
        %v224 = vpack.c.b16 %v221, %v218
        %v225 = vpack.c.b16 %v222, %v219
        %229 = vst [vmem:[#allocation2] sm:$0xff] %v223
        %230 = vst [vmem:[#allocation2 + $0x8] sm:$0xff] %v224
        %231 = vst [vmem:[#allocation2 + $0x10] sm:$0xff] %v225
        %v232 = vld [vmem:[%s184] sm:$0xff]
        %v233 = vld [vmem:[%s184 + $0x8] sm:$0xff]
        %v234 = vld [vmem:[%s184 + $0x10] sm:$0xff]
        %v235 = vld [vmem:[%s184 + $0x18] sm:$0xff]
        %v240 = vunpack.c.l.b16 %v232
        %v241 = vunpack.c.h.b16 %v232
        %v242 = vunpack.c.l.b16 %v233
        %v243 = vunpack.c.h.b16 %v233
        %v244 = vunpack.c.l.b16 %v234
        %v245 = vunpack.c.h.b16 %v234
        %v246 = vunpack.c.l.b16 %v235
        %v247 = vunpack.c.h.b16 %v235
        %v248 = vpack.c.b16 %v244, %v240
        %v249 = vpack.c.b16 %v245, %v241
        %v250 = vpack.c.b16 %v246, %v242
        %v251 = vpack.c.b16 %v247, %v243
        %252 = vrot.lane.b32.xlu0 %v248, 127
        %v253 = vpop.permute.xlu0 %252
        %254 = vrot.lane.b32.xlu0 %v249, 127
        %v255 = vpop.permute.xlu0 %254
        %256 = vrot.lane.b32.xlu0 %v250, 127
        %v257 = vpop.permute.xlu0 %256
        %258 = vrot.lane.b32.xlu0 %v251, 127
        %v259 = vpop.permute.xlu0 %258
        %vm260 = vcmask 1039360
        %v261 = vsel %vm260, %v253, %v255
        %v262 = vsel %vm260, %v255, %v257
        %v263 = vsel %vm260, %v257, %v259
        %267 = vst [vmem:[#allocation2 + $0x18] sm:$0xff] %v261
        %268 = vst [vmem:[#allocation2 + $0x20] sm:$0xff] %v262
        %269 = vst [vmem:[#allocation2 + $0x28] sm:$0xff] %v263
        %v270 = vld [vmem:[%s184] sm:$0xff]
        %v271 = vld [vmem:[%s184 + $0x8] sm:$0xff]
        %v272 = vld [vmem:[%s184 + $0x10] sm:$0xff]
        %v273 = vld [vmem:[%s184 + $0x18] sm:$0xff]
        %v278 = vunpack.c.l.b16 %v270
        %v279 = vunpack.c.h.b16 %v270
        %v280 = vunpack.c.l.b16 %v271
        %v281 = vunpack.c.h.b16 %v271
        %v282 = vunpack.c.l.b16 %v272
        %v283 = vunpack.c.h.b16 %v272
        %v284 = vunpack.c.l.b16 %v273
        %v285 = vunpack.c.h.b16 %v273
        %v286 = vpack.c.b16 %v282, %v278
        %v287 = vpack.c.b16 %v283, %v279
        %v288 = vpack.c.b16 %v284, %v280
        %v289 = vpack.c.b16 %v285, %v281
        %290 = vrot.lane.b32.xlu0 %v286, 126
        %v291 = vpop.permute.xlu0 %290
        %292 = vrot.lane.b32.xlu0 %v287, 126
        %v293 = vpop.permute.xlu0 %292
        %294 = vrot.lane.b32.xlu0 %v288, 126
        %v295 = vpop.permute.xlu0 %294
        %296 = vrot.lane.b32.xlu0 %v289, 126
        %v297 = vpop.permute.xlu0 %296
        %vm298 = vcmask 1031168
        %v299 = vsel %vm298, %v291, %v293
        %v300 = vsel %vm298, %v293, %v295
        %v301 = vsel %vm298, %v295, %v297
        %305 = vst [vmem:[#allocation2 + $0x30] sm:$0xff] %v299
        %306 = vst [vmem:[#allocation2 + $0x38] sm:$0xff] %v300
        %307 = vst [vmem:[#allocation2 + $0x40] sm:$0xff] %v301
        %v308 = vld [vmem:[%s184] sm:$0xff]
        %v309 = vld [vmem:[%s184 + $0x8] sm:$0xff]
        %v310 = vld [vmem:[%s184 + $0x10] sm:$0xff]
        %v311 = vld [vmem:[%s184 + $0x18] sm:$0xff]
        %v316 = vunpack.c.l.b16 %v308
        %v317 = vunpack.c.h.b16 %v308
        %v318 = vunpack.c.l.b16 %v309
        %v319 = vunpack.c.h.b16 %v309
        %v320 = vunpack.c.l.b16 %v310
        %v321 = vunpack.c.h.b16 %v310
        %v322 = vunpack.c.l.b16 %v311
        %v323 = vunpack.c.h.b16 %v311
        %v324 = vpack.c.b16 %v320, %v316
        %v325 = vpack.c.b16 %v321, %v317
        %v326 = vpack.c.b16 %v322, %v318
        %v327 = vpack.c.b16 %v323, %v319
        %328 = vrot.lane.b32.xlu0 %v324, 110
        %v329 = vpop.permute.xlu0 %328
        %330 = vrot.lane.b32.xlu0 %v325, 110
        %v331 = vpop.permute.xlu0 %330
        %332 = vrot.lane.b32.xlu0 %v326, 110
        %v333 = vpop.permute.xlu0 %332
        %334 = vrot.lane.b32.xlu0 %v327, 110
        %v335 = vpop.permute.xlu0 %334
        %vm336 = vcmask 900096
        %v337 = vsel %vm336, %v329, %v331
        %v338 = vsel %vm336, %v331, %v333
        %v339 = vsel %vm336, %v333, %v335
        %343 = vst [vmem:[#allocation2 + $0x48] sm:$0xff] %v337
        %344 = vst [vmem:[#allocation2 + $0x50] sm:$0xff] %v338
        %345 = vst [vmem:[#allocation2 + $0x58] sm:$0xff] %v339
        %v346 = vld [vmem:[%s184] sm:$0xff]
        %v347 = vld [vmem:[%s184 + $0x8] sm:$0xff]
        %v348 = vld [vmem:[%s184 + $0x10] sm:$0xff]
        %v349 = vld [vmem:[%s184 + $0x18] sm:$0xff]
        %v354 = vunpack.c.l.b16 %v346
        %v355 = vunpack.c.h.b16 %v346
        %v356 = vunpack.c.l.b16 %v347
        %v357 = vunpack.c.h.b16 %v347
        %v358 = vunpack.c.l.b16 %v348
        %v359 = vunpack.c.h.b16 %v348
        %v360 = vunpack.c.l.b16 %v349
        %v361 = vunpack.c.h.b16 %v349
        %v362 = vpack.c.b16 %v358, %v354
        %v363 = vpack.c.b16 %v359, %v355
        %v364 = vpack.c.b16 %v360, %v356
        %v365 = vpack.c.b16 %v361, %v357
        %366 = vrot.lane.b32.xlu0 %v362, 109
        %v367 = vpop.permute.xlu0 %366
        %368 = vrot.lane.b32.xlu0 %v363, 109
        %v369 = vpop.permute.xlu0 %368
        %370 = vrot.lane.b32.xlu0 %v364, 109
        %v371 = vpop.permute.xlu0 %370
        %372 = vrot.lane.b32.xlu0 %v365, 109
        %v373 = vpop.permute.xlu0 %372
        %vm374 = vcmask 891904
        %v375 = vsel %vm374, %v367, %v369
        %v376 = vsel %vm374, %v369, %v371
        %v377 = vsel %vm374, %v371, %v373
        %381 = vst [vmem:[#allocation2 + $0x60] sm:$0xff] %v375
        %382 = vst [vmem:[#allocation2 + $0x68] sm:$0xff] %v376
        %383 = vst [vmem:[#allocation2 + $0x70] sm:$0xff] %v377
        %v384 = vld [vmem:[%s184] sm:$0xff]
        %v385 = vld [vmem:[%s184 + $0x8] sm:$0xff]
        %v386 = vld [vmem:[%s184 + $0x10] sm:$0xff]
        %v387 = vld [vmem:[%s184 + $0x18] sm:$0xff]
        %v392 = vunpack.c.l.b16 %v384
        %v393 = vunpack.c.h.b16 %v384
        %v394 = vunpack.c.l.b16 %v385
        %v395 = vunpack.c.h.b16 %v385
        %v396 = vunpack.c.l.b16 %v386
        %v397 = vunpack.c.h.b16 %v386
        %v398 = vunpack.c.l.b16 %v387
        %v399 = vunpack.c.h.b16 %v387
        %v400 = vpack.c.b16 %v396, %v392
        %v401 = vpack.c.b16 %v397, %v393
        %v402 = vpack.c.b16 %v398, %v394
        %v403 = vpack.c.b16 %v399, %v395
        %404 = vrot.lane.b32.xlu0 %v400, 108
        %v405 = vpop.permute.xlu0 %404
        %406 = vrot.lane.b32.xlu0 %v401, 108
        %v407 = vpop.permute.xlu0 %406
        %408 = vrot.lane.b32.xlu0 %v402, 108
        %v409 = vpop.permute.xlu0 %408
        %410 = vrot.lane.b32.xlu0 %v403, 108
        %v411 = vpop.permute.xlu0 %410
        %vm412 = vcmask 883712
        %v413 = vsel %vm412, %v405, %v407
        %v414 = vsel %vm412, %v407, %v409
        %v415 = vsel %vm412, %v409, %v411
        %419 = vst [vmem:[#allocation2 + $0x78] sm:$0xff] %v413
        %420 = vst [vmem:[#allocation2 + $0x80] sm:$0xff] %v414
        %421 = vst [vmem:[#allocation2 + $0x88] sm:$0xff] %v415
        %v422 = vld [vmem:[%s184] sm:$0xff]
        %v423 = vld [vmem:[%s184 + $0x8] sm:$0xff]
        %v424 = vld [vmem:[%s184 + $0x10] sm:$0xff]
        %v425 = vld [vmem:[%s184 + $0x18] sm:$0xff]
        %v430 = vunpack.c.l.b16 %v422
        %v431 = vunpack.c.h.b16 %v422
        %v432 = vunpack.c.l.b16 %v423
        %v433 = vunpack.c.h.b16 %v423
        %v434 = vunpack.c.l.b16 %v424
        %v435 = vunpack.c.h.b16 %v424
        %v436 = vunpack.c.l.b16 %v425
        %v437 = vunpack.c.h.b16 %v425
        %v438 = vpack.c.b16 %v434, %v430
        %v439 = vpack.c.b16 %v435, %v431
        %v440 = vpack.c.b16 %v436, %v432
        %v441 = vpack.c.b16 %v437, %v433
        %442 = vrot.lane.b32.xlu0 %v438, 92
        %v443 = vpop.permute.xlu0 %442
        %444 = vrot.lane.b32.xlu0 %v439, 92
        %v445 = vpop.permute.xlu0 %444
        %446 = vrot.lane.b32.xlu0 %v440, 92
        %v447 = vpop.permute.xlu0 %446
        %448 = vrot.lane.b32.xlu0 %v441, 92
        %v449 = vpop.permute.xlu0 %448
        %vm450 = vcmask 752640
        %v451 = vsel %vm450, %v443, %v445
        %v452 = vsel %vm450, %v445, %v447
        %v453 = vsel %vm450, %v447, %v449
        %457 = vst [vmem:[#allocation2 + $0x90] sm:$0xff] %v451
        %458 = vst [vmem:[#allocation2 + $0x98] sm:$0xff] %v452
        %459 = vst [vmem:[#allocation2 + $0xa0] sm:$0xff] %v453
        %v460 = vld [vmem:[%s184] sm:$0xff]
        %v461 = vld [vmem:[%s184 + $0x8] sm:$0xff]
        %v462 = vld [vmem:[%s184 + $0x10] sm:$0xff]
        %v463 = vld [vmem:[%s184 + $0x18] sm:$0xff]
        %v468 = vunpack.c.l.b16 %v460
        %v469 = vunpack.c.h.b16 %v460
        %v470 = vunpack.c.l.b16 %v461
        %v471 = vunpack.c.h.b16 %v461
        %v472 = vunpack.c.l.b16 %v462
        %v473 = vunpack.c.h.b16 %v462
        %v474 = vunpack.c.l.b16 %v463
        %v475 = vunpack.c.h.b16 %v463
        %v476 = vpack.c.b16 %v472, %v468
        %v477 = vpack.c.b16 %v473, %v469
        %v478 = vpack.c.b16 %v474, %v470
        %v479 = vpack.c.b16 %v475, %v471
        %480 = vrot.lane.b32.xlu0 %v476, 91
        %v481 = vpop.permute.xlu0 %480
        %482 = vrot.lane.b32.xlu0 %v477, 91
        %v483 = vpop.permute.xlu0 %482
        %484 = vrot.lane.b32.xlu0 %v478, 91
        %v485 = vpop.permute.xlu0 %484
        %486 = vrot.lane.b32.xlu0 %v479, 91
        %v487 = vpop.permute.xlu0 %486
        %vm488 = vcmask 744448
        %v489 = vsel %vm488, %v481, %v483
        %v490 = vsel %vm488, %v483, %v485
        %v491 = vsel %vm488, %v485, %v487
        %495 = vst [vmem:[#allocation2 + $0xa8] sm:$0xff] %v489
        %496 = vst [vmem:[#allocation2 + $0xb0] sm:$0xff] %v490
        %497 = vst [vmem:[#allocation2 + $0xb8] sm:$0xff] %v491
        %v498 = vld [vmem:[%s184] sm:$0xff]
        %v499 = vld [vmem:[%s184 + $0x8] sm:$0xff]
        %v500 = vld [vmem:[%s184 + $0x10] sm:$0xff]
        %v501 = vld [vmem:[%s184 + $0x18] sm:$0xff]
        %v506 = vunpack.c.l.b16 %v498
        %v507 = vunpack.c.h.b16 %v498
        %v508 = vunpack.c.l.b16 %v499
        %v509 = vunpack.c.h.b16 %v499
        %v510 = vunpack.c.l.b16 %v500
        %v511 = vunpack.c.h.b16 %v500
        %v512 = vunpack.c.l.b16 %v501
        %v513 = vunpack.c.h.b16 %v501
        %v514 = vpack.c.b16 %v510, %v506
        %v515 = vpack.c.b16 %v511, %v507
        %v516 = vpack.c.b16 %v512, %v508
        %v517 = vpack.c.b16 %v513, %v509
        %518 = vrot.lane.b32.xlu0 %v514, 90
        %v519 = vpop.permute.xlu0 %518
        %520 = vrot.lane.b32.xlu0 %v515, 90
        %v521 = vpop.permute.xlu0 %520
        %522 = vrot.lane.b32.xlu0 %v516, 90
        %v523 = vpop.permute.xlu0 %522
        %524 = vrot.lane.b32.xlu0 %v517, 90
        %v525 = vpop.permute.xlu0 %524
        %vm526 = vcmask 736256
        %v527 = vsel %vm526, %v519, %v521
        %v528 = vsel %vm526, %v521, %v523
        %v529 = vsel %vm526, %v523, %v525
        %533 = vst [vmem:[#allocation2 + $0xc0] sm:$0xff] %v527
        %534 = vst [vmem:[#allocation2 + $0xc8] sm:$0xff] %v528
        %535 = vst [vmem:[#allocation2 + $0xd0] sm:$0xff] %v529
        %v536 = vld [vmem:[%s1] sm:$0xff]
        %v537 = vld [vmem:[%s1 + $0x8] sm:$0xff]
        %v538 = vld [vmem:[#allocation2] sm:$0xff]
        %v539 = vld [vmem:[#allocation2 + $0x8] sm:$0xff]
        %v540 = vld [vmem:[#allocation2 + $0x10] sm:$0xff]
        %v541 = vld [vmem:[#allocation2 + $0x18] sm:$0xff]
        %v542 = vld [vmem:[#allocation2 + $0x20] sm:$0xff]
        %v543 = vld [vmem:[#allocation2 + $0x28] sm:$0xff]
        %v544 = vld [vmem:[#allocation2 + $0x30] sm:$0xff]
        %v545 = vld [vmem:[#allocation2 + $0x38] sm:$0xff]
        %v546 = vld [vmem:[#allocation2 + $0x40] sm:$0xff]
        %v547 = vld [vmem:[#allocation2 + $0x48] sm:$0xff]
        %v548 = vld [vmem:[#allocation2 + $0x50] sm:$0xff]
        %v549 = vld [vmem:[#allocation2 + $0x58] sm:$0xff]
        %v550 = vld [vmem:[#allocation2 + $0x60] sm:$0xff]
        %v551 = vld [vmem:[#allocation2 + $0x68] sm:$0xff]
        %v552 = vld [vmem:[#allocation2 + $0x70] sm:$0xff]
        %v553 = vld [vmem:[#allocation2 + $0x78] sm:$0xff]
        %v554 = vld [vmem:[#allocation2 + $0x80] sm:$0xff]
        %v555 = vld [vmem:[#allocation2 + $0x88] sm:$0xff]
        %v556 = vld [vmem:[#allocation2 + $0x90] sm:$0xff]
        %v557 = vld [vmem:[#allocation2 + $0x98] sm:$0xff]
        %v558 = vld [vmem:[#allocation2 + $0xa0] sm:$0xff]
        %v559 = vld [vmem:[#allocation2 + $0xa8] sm:$0xff]
        %v560 = vld [vmem:[#allocation2 + $0xb0] sm:$0xff]
        %v561 = vld [vmem:[#allocation2 + $0xb8] sm:$0xff]
        %v562 = vld [vmem:[#allocation2 + $0xc0] sm:$0xff]
        %v563 = vld [vmem:[#allocation2 + $0xc8] sm:$0xff]
        %v564 = vld [vmem:[#allocation2 + $0xd0] sm:$0xff]
        %v565 = vld [vmem:[%s2] sm:$0xff]
        %v566 = vld [vmem:[%s2 + $0x8] sm:$0xff]
        %568 = vset.pattern.permute.xlu0 0
        %569 = vperm.xlu0 %568, %v565
        %v570 = vpop.permute.xlu0 %569
        %573 = vset.pattern.permute.xlu0 0
        %574 = vperm.xlu0 %573, %v566
        %v575 = vpop.permute.xlu0 %574
        %v579 = vunpack.c.l.b16 %v536
        %v580 = vunpack.c.h.b16 %v536
        %v581 = vunpack.c.l.b16 %v537
        %v582 = vunpack.c.h.b16 %v537
        %v583 = vpack.c.b16 %v581, %v579
        %v584 = vpack.c.b16 %v582, %v580
        %vm586 = vcmask 130048
        %v588 = vsel %vm586, %v584, 0
        %590 = vmatprep.subr.bf16.mxu0 %v539
        %591 = vmatpush1.bf16.msra.mxu0 %v538
        %592 = vmatprep.subr.bf16.mxu0 %v542
        %593 = vmatpush1.bf16.msra.mxu0 %v541
        %594 = vmatprep.subr.bf16.mxu0 %v545
        %595 = vmatpush1.bf16.msra.mxu0 %v544
        %596 = vmatprep.subr.bf16.mxu0 %v548
        %597 = vmatpush1.bf16.msra.mxu0 %v547
        %598 = vmatprep.subr.bf16.mxu0 %v551
        %599 = vmatpush1.bf16.msra.mxu0 %v550
        %600 = vmatprep.subr.bf16.mxu0 %v554
        %601 = vmatpush1.bf16.msra.mxu0 %v553
        %602 = vmatprep.subr.bf16.mxu0 %v557
        %603 = vmatpush1.bf16.msra.mxu0 %v556
        %604 = vmatprep.subr.bf16.mxu0 %v560
        %605 = vmatpush1.bf16.msra.mxu0 %v559
        %606 = vmatprep.subr.bf16.mxu0 %v563
        %607 = vmatpush1.bf16.msra.mxu0 %v562
        %608 = vmatprep.subr.bf16.mxu0 0
        %609 = vmatpush1.bf16.msra.mxu0 0
        %610 = vmatprep.subr.bf16.mxu0 0
        %611 = vmatpush1.bf16.msra.mxu0 0
        %612 = vmatprep.subr.bf16.mxu0 0
        %613 = vmatpush1.bf16.msra.mxu0 0
        %614 = vmatprep.subr.bf16.mxu0 0
        %615 = vmatpush1.bf16.msra.mxu0 0
        %616 = vmatprep.subr.bf16.mxu0 0
        %617 = vmatpush1.bf16.msra.mxu0 0
        %618 = vmatprep.subr.bf16.mxu0 0
        %619 = vmatpush1.bf16.msra.mxu0 0
        %620 = vmatprep.subr.bf16.mxu0 0
        %621 = vmatpush1.bf16.msra.mxu0 0
        %622 = vmatprep.mubr.bf16.mxu0 %v588
        %623 = vmatmul.mubr.bf16.gmra.mrb[0].mxu0 %v583
        %v624 = vpop.f32.mrb[0].mxu0
        %v625 = vadd.f32 %v570, %v624
        %v626 = vpop.f32.mrb[0].mxu0
        %v627 = vadd.f32 %v570, %v626
        %v628 = vpop.f32.mrb[0].mxu0
        %v629 = vadd.f32 %v575, %v628
        %v630 = vpop.f32.mrb[0].mxu0
        %v631 = vadd.f32 %v575, %v630
        %632 = vdwg.mxu0
        %633 = vmatprep.subr.bf16.mxu0 0
        %634 = vmatpush1.bf16.msra.mxu0 %v540
        %635 = vmatprep.subr.bf16.mxu0 0
        %636 = vmatpush1.bf16.msra.mxu0 %v543
        %637 = vmatprep.subr.bf16.mxu0 0
        %638 = vmatpush1.bf16.msra.mxu0 %v546
        %639 = vmatprep.subr.bf16.mxu0 0
        %640 = vmatpush1.bf16.msra.mxu0 %v549
        %641 = vmatprep.subr.bf16.mxu0 0
        %642 = vmatpush1.bf16.msra.mxu0 %v552
        %643 = vmatprep.subr.bf16.mxu0 0
        %644 = vmatpush1.bf16.msra.mxu0 %v555
        %645 = vmatprep.subr.bf16.mxu0 0
        %646 = vmatpush1.bf16.msra.mxu0 %v558
        %647 = vmatprep.subr.bf16.mxu0 0
        %648 = vmatpush1.bf16.msra.mxu0 %v561
        %649 = vmatprep.subr.bf16.mxu0 0
        %650 = vmatpush1.bf16.msra.mxu0 %v564
        %651 = vmatprep.subr.bf16.mxu0 0
        %652 = vmatpush1.bf16.msra.mxu0 0
        %653 = vmatprep.subr.bf16.mxu0 0
        %654 = vmatpush1.bf16.msra.mxu0 0
        %655 = vmatprep.subr.bf16.mxu0 0
        %656 = vmatpush1.bf16.msra.mxu0 0
        %657 = vmatprep.subr.bf16.mxu0 0
        %658 = vmatpush1.bf16.msra.mxu0 0
        %659 = vmatprep.subr.bf16.mxu0 0
        %660 = vmatpush1.bf16.msra.mxu0 0
        %661 = vmatprep.subr.bf16.mxu0 0
        %662 = vmatpush1.bf16.msra.mxu0 0
        %663 = vmatprep.subr.bf16.mxu0 0
        %664 = vmatpush1.bf16.msra.mxu0 0
        %665 = vmatprep.mubr.bf16.mxu0 %v588
        %666 = vmatmul.mubr.bf16.gmra.mrb[0].mxu0 %v583
        %v667 = vpop.f32.mrb[0].mxu0
        %v668 = vadd.f32 %v570, %v667
        %v669 = vpop.f32.mrb[0].mxu0
        %v670 = vpop.f32.mrb[0].mxu0
        %v671 = vadd.f32 %v575, %v670
        %v672 = vpop.f32.mrb[0].mxu0
        %673 = vdwg.mxu0
        %674 = vst [vmem:[%s206] sm:$0xff] %v625
        %675 = vst [vmem:[%s206 + $0x8] sm:$0xff] %v627
        %676 = vst [vmem:[%s206 + $0x10] sm:$0xff] %v668
        %677 = vst [vmem:[%s206 + $0x18] sm:$0xff] %v629
        %678 = vst [vmem:[%s206 + $0x20] sm:$0xff] %v631
        %679 = vst [vmem:[%s206 + $0x28] sm:$0xff] %v671
        %s680 = sand.u32 %s112, 1
        %s681 = scalar_lea.sflag [#allocation5], %s680
        %s682 = sand.u32 %s112, 1
        %s683 = smul.addr %s682, 48
        %s684 = scalar_lea.vmem [#allocation6], %s683
        // Predicated region
        $region37: #{tpu_custom_call.1} parent=31 // pred_check
          %p685 = pneg %p122
        $region38: #{tpu_custom_call.1} parent=31 // pred_check_branch
          %687 = sbr.rel (%p685) target = $region40
        $region39: #{tpu_custom_call.1} parent=31 // pred_region
          %s688 = smul.u32 3, %s25
          %s690 = ssub.s32 768, 768
          %691 = vsyncadd %s681, %s690
          %s692 = smul.addr %s24, 6
          %s693 = sadd.s32 %s688, %s692
          %s694 = smul.addr %s693, 128
          %s695 = scalar_lea.hbm %s3, %s694
          %s696 = sshll.u32 %s684, 4
          %s697 = int_to_ptr.vmem [resolvable:$true] %s696
          %702 = dma.vmem_to_hbm [thread:$0]  %s697, 768, %s695, %s681, 384, 384, 24
        $region40: #{tpu_custom_call.1} parent=31 // pred_fallthru
          _
      $region32: #{tpu_custom_call.1} parent=5 // pred_fallthru
        _
      %p703 = scmp.le.s32.totalorder 2, %s15
      // Predicated region
      $region41: #{tpu_custom_call.1} parent=5 // pred_check
        %p704 = pneg %p703
      $region42: #{tpu_custom_call.1} parent=5 // pred_check_branch
        %706 = sbr.rel (%p704) target = $region44
      $region43: #{tpu_custom_call.1} parent=5 // pred_region
        %s707 = ssub.s32 %s15, 2
        // Predicated region
        $region45: #{tpu_custom_call.1} parent=43 // pred_check
          %p708 = pneg %p128
        $region46: #{tpu_custom_call.1} parent=43 // pred_check_branch
          %710 = sbr.rel (%p708) target = $region48
        $region47: #{tpu_custom_call.1} parent=43 // pred_region
          %s711 = sand.u32 %s113, 1
          %s712 = scalar_lea.sflag [#allocation5], %s711
          %s713 = sand.u32 %s113, 1
          %s714 = smul.addr %s713, 48
          %s715 = scalar_lea.vmem [#allocation6], %s714
          %716 = dma.done %s712, 768
        $region48: #{tpu_custom_call.1} parent=43 // pred_fallthru
          _
      $region44: #{tpu_custom_call.1} parent=5 // pred_fallthru
        _
    $region6: #{tpu_custom_call.1} parent=1 // loop_footer
      %s19 = sadd.s32 1, %s15
    $region7: #{tpu_custom_call.1} parent=1 // loop_footer_branch
      %14 = sbr.rel target = $region3
    $region8: #{tpu_custom_call.1} parent=1 // loop_exit
      _
    %717 = vsyncpa [#allocation4], 1
    %s718 = scalar_lea.sflag [#allocation4], 1
    %719 = vsyncpa %s718, 1
    %720 = vsyncpa [#allocation5], 1
    %s721 = scalar_lea.sflag [#allocation5], 1
    %722 = vsyncpa %s721, 1

</llo_original>
